<compile_context>
chip_gen: v7x
topology: tpu7x:2x2x1
jax: 0.10.0
libtpu: 0.0.40
codegen_flags: <defaults>
</compile_context>

<pallas_src>
import functools

import jax
import jax.numpy as jnp
from jax.experimental import pallas as pl
from jax.experimental.pallas import tpu as pltpu


def _encoder_layer_kernel(nhead, batch_block, seq_len, ff_block,
                          src_ref, pos_ref,
                          wqk_ref, bqk_ref, wv_ref, bv_ref,
                          wo_ref, bo_ref,
                          w1_ref, b1_ref, w2_ref, b2_ref,
                          g1_ref, be1_ref, g2_ref, be2_ref,
                          out_ref, heads_ref):
    src = src_ref[...]                       # (rows, D) f32, rows are batch-major
    pos = pos_ref[...]
    rows, D = src.shape
    S = seq_len
    bb = batch_block
    hd = D // nhead

    # --- fused Q|K projection and V projection: bf16 MXU inputs, f32 accumulation.
    #     (1/sqrt(hd) scale is pre-folded into the Q half of wqk/bqk in the wrapper.)
    x_qk = (src + pos).astype(jnp.bfloat16)
    qk = jnp.dot(x_qk, wqk_ref[...], preferred_element_type=jnp.float32) + bqk_ref[...]
    v = jnp.dot(src.astype(jnp.bfloat16), wv_ref[...],
                preferred_element_type=jnp.float32) + bv_ref[...]

    q = qk[:, :D].reshape(bb, S, D)          # leading-axis splits: no data movement
    k = qk[:, D:].reshape(bb, S, D)
    v = v.reshape(bb, S, D)

    # --- multi-head attention.  Per-head scores/softmax/PV batched over the batch dim
    #     via dot_general (no per-batch Python loop).  Each head's output lands in a
    #     bf16 VMEM scratch slice (no lane concat), then a single (rows, D) @ (D, D)
    #     output projection runs on the MXU.
    for h in range(nhead):
        cols = slice(h * hd, (h + 1) * hd)
        qh = q[:, :, cols].astype(jnp.bfloat16)                       # (bb, S, hd)
        kh = k[:, :, cols].astype(jnp.bfloat16)
        vh = v[:, :, cols].astype(jnp.bfloat16)
        s = jax.lax.dot_general(qh, kh, (((2,), (2,)), ((0,), (0,))),
                                preferred_element_type=jnp.float32)   # (bb, S, S)
        s = s - jnp.max(s, axis=-1, keepdims=True)
        p = jnp.exp(s)
        p = p * pl.reciprocal(jnp.sum(p, axis=-1, keepdims=True), approx=True)
        oh = jax.lax.dot_general(p.astype(jnp.bfloat16), vh,
                                 (((2,), (1,)), ((0,), (0,))),
                                 preferred_element_type=jnp.float32)  # (bb, S, hd)
        heads_ref[:, cols] = oh.reshape(rows, hd).astype(jnp.bfloat16)

    attn = jnp.dot(heads_ref[...], wo_ref[...],
                   preferred_element_type=jnp.float32) + bo_ref[...]

    # --- residual + LayerNorm 1 (f32 elementwise / stats)
    x = src + attn
    mu = jnp.mean(x, axis=-1, keepdims=True)
    var = jnp.mean((x - mu) ** 2, axis=-1, keepdims=True)
    x = (x - mu) * jax.lax.rsqrt(var + 1e-5) * g1_ref[...] + be1_ref[...]

    # --- FFN: linear2(relu(linear1(x))), blocked over the FF dimension.
    x_bf = x.astype(jnp.bfloat16)
    ff_total = w1_ref.shape[1]
    ff = None
    for f0 in range(0, ff_total, ff_block):
        h1 = jnp.dot(x_bf, w1_ref[:, f0:f0 + ff_block],
                     preferred_element_type=jnp.float32) + b1_ref[:, f0:f0 + ff_block]
        h1 = jnp.maximum(h1, 0.0).astype(jnp.bfloat16)
        part = jnp.dot(h1, w2_ref[f0:f0 + ff_block, :],
                       preferred_element_type=jnp.float32)
        ff = part if ff is None else ff + part
    ff = ff + b2_ref[...]

    # --- residual + LayerNorm 2
    x = x + ff
    mu = jnp.mean(x, axis=-1, keepdims=True)
    var = jnp.mean((x - mu) ** 2, axis=-1, keepdims=True)
    x = (x - mu) * jax.lax.rsqrt(var + 1e-5) * g2_ref[...] + be2_ref[...]

    out_ref[...] = x.astype(out_ref.dtype)


def _default_batch_block(batch, seq_len):
    """Largest divisor of `batch` giving ~<=512 rows/step and >=2 grid steps."""
    cap = max(1, 512 // max(seq_len, 1))
    if batch >= 2:
        cap = min(cap, batch // 2)   # >= 2 grid steps so both v7x TensorCores do work
    best = 1
    for d in range(1, batch + 1):
        if batch % d == 0 and d <= cap:
            best = d
    return best


def transformer_encoder_layer(src, pos, params, nhead, *, batch_block=None,
                              ff_block=1024):
    """src, pos: (S, B, D) float32.  Returns (S, B, D).
    Eval-mode semantics (dropout = identity), matching TransformerEncoderLayer.forward."""
    S, B, D = src.shape
    assert D % nhead == 0
    hd = D // nhead
    FF = params['w1'].shape[1]

    if batch_block is None:
        batch_block = _default_batch_block(B, S)
    assert B % batch_block == 0
    nb = B // batch_block
    rows = batch_block * S

    if ff_block is None or FF % ff_block != 0:
        ff_block = FF
    ff_block = min(ff_block, FF)

    # Batch-major flatten once (single cheap XLA copy) so per-batch rows inside the
    # kernel are tile-aligned slices of the flattened row block.
    src_flat = jnp.transpose(src, (1, 0, 2)).reshape(B * S, D)
    pos_flat = jnp.transpose(pos, (1, 0, 2)).reshape(B * S, D)

    # Weight prep (constant-folds under jit):
    #  * attention 1/sqrt(hd) scale folded into the Q projection weight/bias,
    #  * Q and K projections fused into one (D, 2D) matmul,
    #  * matmul weights cast to bf16 (MXU-native); biases / LayerNorm params stay f32.
    scale = 1.0 / (hd ** 0.5)
    wqk = jnp.concatenate([params['wq'] * scale, params['wk']], axis=1).astype(jnp.bfloat16)
    bqk = jnp.concatenate([params['bq'] * scale, params['bk']], axis=1)

    weights = [
        wqk, bqk,
        params['wv'].astype(jnp.bfloat16), params['bv'],
        params['wo'].astype(jnp.bfloat16), params['bo'],
        params['w1'].astype(jnp.bfloat16), params['b1'],
        params['w2'].astype(jnp.bfloat16), params['b2'],
        params['g1'], params['be1'], params['g2'], params['be2'],
    ]

    row_spec = pl.BlockSpec((rows, D), lambda i: (i, 0))
    # Grid-invariant weight blocks (same block index every step -> fetched once by the
    # pipeline).  At production sizes (D~1024, FF=4D) also set
    # pipeline_mode=pl.Buffered(1) here so invariant weights are not double-buffered.
    weight_specs = [pl.BlockSpec(w.shape, lambda i, n=w.ndim: (0,) * n) for w in weights]

    out_flat = pl.pallas_call(
        functools.partial(_encoder_layer_kernel, nhead, batch_block, S, ff_block),
        out_shape=jax.ShapeDtypeStruct((B * S, D), src.dtype),
        grid=(nb,),
        in_specs=[row_spec, row_spec] + weight_specs,
        out_specs=row_spec,
        scratch_shapes=[pltpu.VMEM((rows, D), jnp.bfloat16)],
        compiler_params=pltpu.CompilerParams(
            dimension_semantics=("parallel",),
            vmem_limit_bytes=48 * 1024 * 1024,
        ),
    )(src_flat, pos_flat, *weights)

    return jnp.transpose(out_flat.reshape(B, S, D), (1, 0, 2))


def reference(src, pos, params, nhead):
    """Pure-JAX f32 reference with identical math for verification."""
    S, B, D = src.shape
    hd = D // nhead
    scale = 1.0 / (hd ** 0.5)

    def one_batch(s_bd, p_bd):
        x_qk = s_bd + p_bd
        q = x_qk @ params['wq'] + params['bq']
        k = x_qk @ params['wk'] + params['bk']
        v = s_bd @ params['wv'] + params['bv']
        qh = q.reshape(S, nhead, hd).transpose(1, 0, 2)
        kh = k.reshape(S, nhead, hd).transpose(1, 0, 2)
        vh = v.reshape(S, nhead, hd).transpose(1, 0, 2)
        sc = jnp.einsum('hqd,hkd->hqk', qh, kh) * scale
        p = jax.nn.softmax(sc, axis=-1)
        a = jnp.einsum('hqk,hkd->hqd', p, vh).transpose(1, 0, 2).reshape(S, D)
        a = a @ params['wo'] + params['bo']
        x = s_bd + a
        mu = x.mean(-1, keepdims=True)
        var = ((x - mu) ** 2).mean(-1, keepdims=True)
        x = (x - mu) * jax.lax.rsqrt(var + 1e-5) * params['g1'] + params['be1']
        h1 = jnp.maximum(x @ params['w1'] + params['b1'], 0.0)
        ff = h1 @ params['w2'] + params['b2']
        x = x + ff
        mu = x.mean(-1, keepdims=True)
        var = ((x - mu) ** 2).mean(-1, keepdims=True)
        x = (x - mu) * jax.lax.rsqrt(var + 1e-5) * params['g2'] + params['be2']
        return x

    return jax.vmap(one_batch, in_axes=(1, 1), out_axes=1)(src, pos)


if __name__ == "__main__":
    S, B, D, NHEAD, FF = 8, 2, 32, 4, 64

    key = jax.random.PRNGKey(0)
    keys = jax.random.split(key, 14)

    params = {
        # attention projections (math layout: x @ W, W is (in, out))
        'wq': jax.random.normal(keys[0], (D, D), jnp.float32) * 0.1,
        'bq': jax.random.normal(keys[1], (1, D), jnp.float32) * 0.1,
        'wk': jax.random.normal(keys[2], (D, D), jnp.float32) * 0.1,
        'bk': jax.random.normal(keys[3], (1, D), jnp.float32) * 0.1,
        'wv': jax.random.normal(keys[4], (D, D), jnp.float32) * 0.1,
        'bv': jax.random.normal(keys[5], (1, D), jnp.float32) * 0.1,
        'wo': jax.random.normal(keys[6], (D, D), jnp.float32) * 0.1,
        'bo': jax.random.normal(keys[7], (1, D), jnp.float32) * 0.1,
        # feed-forward
        'w1': jax.random.normal(keys[8], (D, FF), jnp.float32) * 0.1,
        'b1': jax.random.normal(keys[9], (1, FF), jnp.float32) * 0.1,
        'w2': jax.random.normal(keys[10], (FF, D), jnp.float32) * 0.1,
        'b2': jax.random.normal(keys[11], (1, D), jnp.float32) * 0.1,
        # layer norms (PyTorch default init: weight=1, bias=0)
        'g1': jnp.ones((1, D), jnp.float32),
        'be1': jnp.zeros((1, D), jnp.float32),
        'g2': jnp.ones((1, D), jnp.float32),
        'be2': jnp.zeros((1, D), jnp.float32),
    }

    src = jax.random.normal(keys[12], (S, B, D), jnp.float32)
    pos = jax.random.normal(keys[13], (S, B, D), jnp.float32)

    out = transformer_encoder_layer(src, pos, params, NHEAD)
    out = jax.block_until_ready(out)

    ref = jax.block_until_ready(reference(src, pos, params, NHEAD))
    assert out.shape == (S, B, D)
    # Tolerance accounts for bf16 MXU inputs (f32 accumulation) and the EUP
    # approximate reciprocal in the softmax denominator (inference-grade precision).
    assert jnp.allclose(out, ref, atol=2e-2, rtol=2e-2), "kernel output mismatch vs reference"

    print("KERNEL_OK")
</pallas_src>

<mosaic_0001>
module attributes {stable_mosaic.version = 11 : i64} {
  func.func @_encoder_layer_kernel(%arg0: i32, %arg1: memref<8x32xf32, #tpu.memory_space<vmem>>, %arg2: memref<8x32xf32, #tpu.memory_space<vmem>>, %arg3: memref<32x64xbf16, #tpu.memory_space<vmem>>, %arg4: memref<1x64xf32, #tpu.memory_space<vmem>>, %arg5: memref<32x32xbf16, #tpu.memory_space<vmem>>, %arg6: memref<1x32xf32, #tpu.memory_space<vmem>>, %arg7: memref<32x32xbf16, #tpu.memory_space<vmem>>, %arg8: memref<1x32xf32, #tpu.memory_space<vmem>>, %arg9: memref<32x64xbf16, #tpu.memory_space<vmem>>, %arg10: memref<1x64xf32, #tpu.memory_space<vmem>>, %arg11: memref<64x32xbf16, #tpu.memory_space<vmem>>, %arg12: memref<1x32xf32, #tpu.memory_space<vmem>>, %arg13: memref<1x32xf32, #tpu.memory_space<vmem>>, %arg14: memref<1x32xf32, #tpu.memory_space<vmem>>, %arg15: memref<1x32xf32, #tpu.memory_space<vmem>>, %arg16: memref<1x32xf32, #tpu.memory_space<vmem>>, %arg17: memref<8x32xf32, #tpu.memory_space<vmem>>, %arg18: memref<8x32xbf16, #tpu.memory_space<vmem>>) attributes {dimension_semantics = [#tpu.dimension_semantics<parallel>], iteration_bounds = array<i64: 2>, scalar_prefetch = 0 : i64, scratch_operands = 1 : i64, tpu.core_type = #tpu.core_type<tc>, window_params = [{transform_indices = @transform_0, window_bounds = array<i64: 8, 32>}, {transform_indices = @transform_1, window_bounds = array<i64: 8, 32>}, {pipeline_mode = #tpu.pipeline_mode<synchronous>, transform_indices = @transform_2, window_bounds = array<i64: 32, 64>}, {pipeline_mode = #tpu.pipeline_mode<synchronous>, transform_indices = @transform_3, window_bounds = array<i64: 1, 64>}, {pipeline_mode = #tpu.pipeline_mode<synchronous>, transform_indices = @transform_4, window_bounds = array<i64: 32, 32>}, {pipeline_mode = #tpu.pipeline_mode<synchronous>, transform_indices = @transform_5, window_bounds = array<i64: 1, 32>}, {pipeline_mode = #tpu.pipeline_mode<synchronous>, transform_indices = @transform_6, window_bounds = array<i64: 32, 32>}, {pipeline_mode = #tpu.pipeline_mode<synchronous>, transform_indices = @transform_7, window_bounds = array<i64: 1, 32>}, {pipeline_mode = #tpu.pipeline_mode<synchronous>, transform_indices = @transform_8, window_bounds = array<i64: 32, 64>}, {pipeline_mode = #tpu.pipeline_mode<synchronous>, transform_indices = @transform_9, window_bounds = array<i64: 1, 64>}, {pipeline_mode = #tpu.pipeline_mode<synchronous>, transform_indices = @transform_10, window_bounds = array<i64: 64, 32>}, {pipeline_mode = #tpu.pipeline_mode<synchronous>, transform_indices = @transform_11, window_bounds = array<i64: 1, 32>}, {pipeline_mode = #tpu.pipeline_mode<synchronous>, transform_indices = @transform_12, window_bounds = array<i64: 1, 32>}, {pipeline_mode = #tpu.pipeline_mode<synchronous>, transform_indices = @transform_13, window_bounds = array<i64: 1, 32>}, {pipeline_mode = #tpu.pipeline_mode<synchronous>, transform_indices = @transform_14, window_bounds = array<i64: 1, 32>}, {pipeline_mode = #tpu.pipeline_mode<synchronous>, transform_indices = @transform_15, window_bounds = array<i64: 1, 32>}, {transform_indices = @transform_16, window_bounds = array<i64: 8, 32>}]} {
    %c0 = arith.constant 0 : index
    %c0_0 = arith.constant 0 : index
    %0 = vector.load %arg1[%c0, %c0_0] : memref<8x32xf32, #tpu.memory_space<vmem>>, vector<8x32xf32>
    %c0_1 = arith.constant 0 : index
    %c0_2 = arith.constant 0 : index
    %1 = vector.load %arg2[%c0_1, %c0_2] : memref<8x32xf32, #tpu.memory_space<vmem>>, vector<8x32xf32>
    %2 = arith.addf %0, %1 : vector<8x32xf32>
    %3 = arith.truncf %2 : vector<8x32xf32> to vector<8x32xbf16>
    %c0_3 = arith.constant 0 : index
    %c0_4 = arith.constant 0 : index
    %4 = vector.load %arg3[%c0_3, %c0_4] : memref<32x64xbf16, #tpu.memory_space<vmem>>, vector<32x64xbf16>
    %cst = arith.constant dense<0.000000e+00> : vector<8x64xf32>
    %5 = tpu.matmul %3, %4, %cst {dimension_numbers = #tpu.dot_dimension_numbers<[1], [0], [0], [1], [0, 0, 1, 1], [], []>} : vector<8x32xbf16>, vector<32x64xbf16>, vector<8x64xf32> -> vector<8x64xf32>
    %c0_5 = arith.constant 0 : index
    %c0_6 = arith.constant 0 : index
    %6 = vector.load %arg4[%c0_5, %c0_6] : memref<1x64xf32, #tpu.memory_space<vmem>>, vector<1x64xf32>
    %7 = vector.broadcast %6 : vector<1x64xf32> to vector<8x64xf32>
    %8 = arith.addf %5, %7 : vector<8x64xf32>
    %9 = arith.truncf %0 : vector<8x32xf32> to vector<8x32xbf16>
    %c0_7 = arith.constant 0 : index
    %c0_8 = arith.constant 0 : index
    %10 = vector.load %arg5[%c0_7, %c0_8] : memref<32x32xbf16, #tpu.memory_space<vmem>>, vector<32x32xbf16>
    %cst_9 = arith.constant dense<0.000000e+00> : vector<8x32xf32>
    %11 = tpu.matmul %9, %10, %cst_9 {dimension_numbers = #tpu.dot_dimension_numbers<[1], [0], [0], [1], [0, 0, 1, 1], [], []>} : vector<8x32xbf16>, vector<32x32xbf16>, vector<8x32xf32> -> vector<8x32xf32>
    %c0_10 = arith.constant 0 : index
    %c0_11 = arith.constant 0 : index
    %12 = vector.load %arg6[%c0_10, %c0_11] : memref<1x32xf32, #tpu.memory_space<vmem>>, vector<1x32xf32>
    %13 = vector.broadcast %12 : vector<1x32xf32> to vector<8x32xf32>
    %14 = arith.addf %11, %13 : vector<8x32xf32>
    %15 = vector.extract_strided_slice %8 {offsets = [0, 0], sizes = [8, 32], strides = [1, 1]} : vector<8x64xf32> to vector<8x32xf32>
    %16 = vector.shape_cast %15 : vector<8x32xf32> to vector<1x8x32xf32>
    %17 = vector.extract_strided_slice %8 {offsets = [0, 32], sizes = [8, 32], strides = [1, 1]} : vector<8x64xf32> to vector<8x32xf32>
    %18 = vector.shape_cast %17 : vector<8x32xf32> to vector<1x8x32xf32>
    %19 = vector.shape_cast %14 : vector<8x32xf32> to vector<1x8x32xf32>
    %20 = vector.extract_strided_slice %16 {offsets = [0, 0, 0], sizes = [1, 8, 8], strides = [1, 1, 1]} : vector<1x8x32xf32> to vector<1x8x8xf32>
    %21 = arith.truncf %20 : vector<1x8x8xf32> to vector<1x8x8xbf16>
    %22 = vector.extract_strided_slice %18 {offsets = [0, 0, 0], sizes = [1, 8, 8], strides = [1, 1, 1]} : vector<1x8x32xf32> to vector<1x8x8xf32>
    %23 = arith.truncf %22 : vector<1x8x8xf32> to vector<1x8x8xbf16>
    %24 = vector.extract_strided_slice %19 {offsets = [0, 0, 0], sizes = [1, 8, 8], strides = [1, 1, 1]} : vector<1x8x32xf32> to vector<1x8x8xf32>
    %25 = arith.truncf %24 : vector<1x8x8xf32> to vector<1x8x8xbf16>
    %cst_12 = arith.constant dense<0.000000e+00> : vector<1x8x8xf32>
    %26 = tpu.matmul %21, %23, %cst_12 {dimension_numbers = #tpu.dot_dimension_numbers<[2], [2], [1], [1], [0, 0, 0, 1, 1, 1], [0], [0]>} : vector<1x8x8xbf16>, vector<1x8x8xbf16>, vector<1x8x8xf32> -> vector<1x8x8xf32>
    %cst_13 = arith.constant dense<0xFF800000> : vector<1x8xf32>
    %27 = vector.multi_reduction <maximumf>, %26, %cst_13 [2] : vector<1x8x8xf32> to vector<1x8xf32>
    %28 = vector.shape_cast %27 : vector<1x8xf32> to vector<1x8x1xf32>
    %29 = vector.broadcast %28 : vector<1x8x1xf32> to vector<1x8x8xf32>
    %30 = arith.subf %26, %29 : vector<1x8x8xf32>
    %31 = math.exp %30 : vector<1x8x8xf32>
    %cst_14 = arith.constant dense<0.000000e+00> : vector<1x8xf32>
    %32 = vector.multi_reduction <add>, %31, %cst_14 [2] : vector<1x8x8xf32> to vector<1x8xf32>
    %33 = vector.shape_cast %32 : vector<1x8xf32> to vector<1x8x1xf32>
    %34 = tpu.reciprocal %33 {approx = true} : vector<1x8x1xf32> -> vector<1x8x1xf32>
    %35 = vector.broadcast %34 : vector<1x8x1xf32> to vector<1x8x8xf32>
    %36 = arith.mulf %31, %35 : vector<1x8x8xf32>
    %37 = arith.truncf %36 : vector<1x8x8xf32> to vector<1x8x8xbf16>
    %cst_15 = arith.constant dense<0.000000e+00> : vector<1x8x8xf32>
    %38 = tpu.matmul %37, %25, %cst_15 {dimension_numbers = #tpu.dot_dimension_numbers<[2], [1], [1], [2], [0, 0, 0, 1, 1, 2], [0], [0]>} : vector<1x8x8xbf16>, vector<1x8x8xbf16>, vector<1x8x8xf32> -> vector<1x8x8xf32>
    %39 = vector.shape_cast %38 : vector<1x8x8xf32> to vector<8x8xf32>
    %40 = arith.truncf %39 : vector<8x8xf32> to vector<8x8xbf16>
    %c0_16 = arith.constant 0 : index
    %c0_17 = arith.constant 0 : index
    %41 = vector.load %arg18[%c0_16, %c0_17] : memref<8x32xbf16, #tpu.memory_space<vmem>>, vector<8x8xbf16>
    tpu.vector_store %arg18[%c0_16, %c0_17], %40 {strides = array<i32>} : memref<8x32xbf16, #tpu.memory_space<vmem>>, vector<8x8xbf16>,
    %42 = vector.extract_strided_slice %16 {offsets = [0, 0, 8], sizes = [1, 8, 8], strides = [1, 1, 1]} : vector<1x8x32xf32> to vector<1x8x8xf32>
    %43 = arith.truncf %42 : vector<1x8x8xf32> to vector<1x8x8xbf16>
    %44 = vector.extract_strided_slice %18 {offsets = [0, 0, 8], sizes = [1, 8, 8], strides = [1, 1, 1]} : vector<1x8x32xf32> to vector<1x8x8xf32>
    %45 = arith.truncf %44 : vector<1x8x8xf32> to vector<1x8x8xbf16>
    %46 = vector.extract_strided_slice %19 {offsets = [0, 0, 8], sizes = [1, 8, 8], strides = [1, 1, 1]} : vector<1x8x32xf32> to vector<1x8x8xf32>
    %47 = arith.truncf %46 : vector<1x8x8xf32> to vector<1x8x8xbf16>
    %cst_18 = arith.constant dense<0.000000e+00> : vector<1x8x8xf32>
    %48 = tpu.matmul %43, %45, %cst_18 {dimension_numbers = #tpu.dot_dimension_numbers<[2], [2], [1], [1], [0, 0, 0, 1, 1, 1], [0], [0]>} : vector<1x8x8xbf16>, vector<1x8x8xbf16>, vector<1x8x8xf32> -> vector<1x8x8xf32>
    %cst_19 = arith.constant dense<0xFF800000> : vector<1x8xf32>
    %49 = vector.multi_reduction <maximumf>, %48, %cst_19 [2] : vector<1x8x8xf32> to vector<1x8xf32>
    %50 = vector.shape_cast %49 : vector<1x8xf32> to vector<1x8x1xf32>
    %51 = vector.broadcast %50 : vector<1x8x1xf32> to vector<1x8x8xf32>
    %52 = arith.subf %48, %51 : vector<1x8x8xf32>
    %53 = math.exp %52 : vector<1x8x8xf32>
    %cst_20 = arith.constant dense<0.000000e+00> : vector<1x8xf32>
    %54 = vector.multi_reduction <add>, %53, %cst_20 [2] : vector<1x8x8xf32> to vector<1x8xf32>
    %55 = vector.shape_cast %54 : vector<1x8xf32> to vector<1x8x1xf32>
    %56 = tpu.reciprocal %55 {approx = true} : vector<1x8x1xf32> -> vector<1x8x1xf32>
    %57 = vector.broadcast %56 : vector<1x8x1xf32> to vector<1x8x8xf32>
    %58 = arith.mulf %53, %57 : vector<1x8x8xf32>
    %59 = arith.truncf %58 : vector<1x8x8xf32> to vector<1x8x8xbf16>
    %cst_21 = arith.constant dense<0.000000e+00> : vector<1x8x8xf32>
    %60 = tpu.matmul %59, %47, %cst_21 {dimension_numbers = #tpu.dot_dimension_numbers<[2], [1], [1], [2], [0, 0, 0, 1, 1, 2], [0], [0]>} : vector<1x8x8xbf16>, vector<1x8x8xbf16>, vector<1x8x8xf32> -> vector<1x8x8xf32>
    %61 = vector.shape_cast %60 : vector<1x8x8xf32> to vector<8x8xf32>
    %62 = arith.truncf %61 : vector<8x8xf32> to vector<8x8xbf16>
    %c0_22 = arith.constant 0 : index
    %c8 = arith.constant 8 : index
    %63 = vector.load %arg18[%c0_22, %c8] : memref<8x32xbf16, #tpu.memory_space<vmem>>, vector<8x8xbf16>
    tpu.vector_store %arg18[%c0_22, %c8], %62 {strides = array<i32>} : memref<8x32xbf16, #tpu.memory_space<vmem>>, vector<8x8xbf16>,
    %64 = vector.extract_strided_slice %16 {offsets = [0, 0, 16], sizes = [1, 8, 8], strides = [1, 1, 1]} : vector<1x8x32xf32> to vector<1x8x8xf32>
    %65 = arith.truncf %64 : vector<1x8x8xf32> to vector<1x8x8xbf16>
    %66 = vector.extract_strided_slice %18 {offsets = [0, 0, 16], sizes = [1, 8, 8], strides = [1, 1, 1]} : vector<1x8x32xf32> to vector<1x8x8xf32>
    %67 = arith.truncf %66 : vector<1x8x8xf32> to vector<1x8x8xbf16>
    %68 = vector.extract_strided_slice %19 {offsets = [0, 0, 16], sizes = [1, 8, 8], strides = [1, 1, 1]} : vector<1x8x32xf32> to vector<1x8x8xf32>
    %69 = arith.truncf %68 : vector<1x8x8xf32> to vector<1x8x8xbf16>
    %cst_23 = arith.constant dense<0.000000e+00> : vector<1x8x8xf32>
    %70 = tpu.matmul %65, %67, %cst_23 {dimension_numbers = #tpu.dot_dimension_numbers<[2], [2], [1], [1], [0, 0, 0, 1, 1, 1], [0], [0]>} : vector<1x8x8xbf16>, vector<1x8x8xbf16>, vector<1x8x8xf32> -> vector<1x8x8xf32>
    %cst_24 = arith.constant dense<0xFF800000> : vector<1x8xf32>
    %71 = vector.multi_reduction <maximumf>, %70, %cst_24 [2] : vector<1x8x8xf32> to vector<1x8xf32>
    %72 = vector.shape_cast %71 : vector<1x8xf32> to vector<1x8x1xf32>
    %73 = vector.broadcast %72 : vector<1x8x1xf32> to vector<1x8x8xf32>
    %74 = arith.subf %70, %73 : vector<1x8x8xf32>
    %75 = math.exp %74 : vector<1x8x8xf32>
    %cst_25 = arith.constant dense<0.000000e+00> : vector<1x8xf32>
    %76 = vector.multi_reduction <add>, %75, %cst_25 [2] : vector<1x8x8xf32> to vector<1x8xf32>
    %77 = vector.shape_cast %76 : vector<1x8xf32> to vector<1x8x1xf32>
    %78 = tpu.reciprocal %77 {approx = true} : vector<1x8x1xf32> -> vector<1x8x1xf32>
    %79 = vector.broadcast %78 : vector<1x8x1xf32> to vector<1x8x8xf32>
    %80 = arith.mulf %75, %79 : vector<1x8x8xf32>
    %81 = arith.truncf %80 : vector<1x8x8xf32> to vector<1x8x8xbf16>
    %cst_26 = arith.constant dense<0.000000e+00> : vector<1x8x8xf32>
    %82 = tpu.matmul %81, %69, %cst_26 {dimension_numbers = #tpu.dot_dimension_numbers<[2], [1], [1], [2], [0, 0, 0, 1, 1, 2], [0], [0]>} : vector<1x8x8xbf16>, vector<1x8x8xbf16>, vector<1x8x8xf32> -> vector<1x8x8xf32>
    %83 = vector.shape_cast %82 : vector<1x8x8xf32> to vector<8x8xf32>
    %84 = arith.truncf %83 : vector<8x8xf32> to vector<8x8xbf16>
    %c0_27 = arith.constant 0 : index
    %c16 = arith.constant 16 : index
    %85 = vector.load %arg18[%c0_27, %c16] : memref<8x32xbf16, #tpu.memory_space<vmem>>, vector<8x8xbf16>
    tpu.vector_store %arg18[%c0_27, %c16], %84 {strides = array<i32>} : memref<8x32xbf16, #tpu.memory_space<vmem>>, vector<8x8xbf16>,
    %86 = vector.extract_strided_slice %16 {offsets = [0, 0, 24], sizes = [1, 8, 8], strides = [1, 1, 1]} : vector<1x8x32xf32> to vector<1x8x8xf32>
    %87 = arith.truncf %86 : vector<1x8x8xf32> to vector<1x8x8xbf16>
    %88 = vector.extract_strided_slice %18 {offsets = [0, 0, 24], sizes = [1, 8, 8], strides = [1, 1, 1]} : vector<1x8x32xf32> to vector<1x8x8xf32>
    %89 = arith.truncf %88 : vector<1x8x8xf32> to vector<1x8x8xbf16>
    %90 = vector.extract_strided_slice %19 {offsets = [0, 0, 24], sizes = [1, 8, 8], strides = [1, 1, 1]} : vector<1x8x32xf32> to vector<1x8x8xf32>
    %91 = arith.truncf %90 : vector<1x8x8xf32> to vector<1x8x8xbf16>
    %cst_28 = arith.constant dense<0.000000e+00> : vector<1x8x8xf32>
    %92 = tpu.matmul %87, %89, %cst_28 {dimension_numbers = #tpu.dot_dimension_numbers<[2], [2], [1], [1], [0, 0, 0, 1, 1, 1], [0], [0]>} : vector<1x8x8xbf16>, vector<1x8x8xbf16>, vector<1x8x8xf32> -> vector<1x8x8xf32>
    %cst_29 = arith.constant dense<0xFF800000> : vector<1x8xf32>
    %93 = vector.multi_reduction <maximumf>, %92, %cst_29 [2] : vector<1x8x8xf32> to vector<1x8xf32>
    %94 = vector.shape_cast %93 : vector<1x8xf32> to vector<1x8x1xf32>
    %95 = vector.broadcast %94 : vector<1x8x1xf32> to vector<1x8x8xf32>
    %96 = arith.subf %92, %95 : vector<1x8x8xf32>
    %97 = math.exp %96 : vector<1x8x8xf32>
    %cst_30 = arith.constant dense<0.000000e+00> : vector<1x8xf32>
    %98 = vector.multi_reduction <add>, %97, %cst_30 [2] : vector<1x8x8xf32> to vector<1x8xf32>
    %99 = vector.shape_cast %98 : vector<1x8xf32> to vector<1x8x1xf32>
    %100 = tpu.reciprocal %99 {approx = true} : vector<1x8x1xf32> -> vector<1x8x1xf32>
    %101 = vector.broadcast %100 : vector<1x8x1xf32> to vector<1x8x8xf32>
    %102 = arith.mulf %97, %101 : vector<1x8x8xf32>
    %103 = arith.truncf %102 : vector<1x8x8xf32> to vector<1x8x8xbf16>
    %cst_31 = arith.constant dense<0.000000e+00> : vector<1x8x8xf32>
    %104 = tpu.matmul %103, %91, %cst_31 {dimension_numbers = #tpu.dot_dimension_numbers<[2], [1], [1], [2], [0, 0, 0, 1, 1, 2], [0], [0]>} : vector<1x8x8xbf16>, vector<1x8x8xbf16>, vector<1x8x8xf32> -> vector<1x8x8xf32>
    %105 = vector.shape_cast %104 : vector<1x8x8xf32> to vector<8x8xf32>
    %106 = arith.truncf %105 : vector<8x8xf32> to vector<8x8xbf16>
    %c0_32 = arith.constant 0 : index
    %c24 = arith.constant 24 : index
    %107 = vector.load %arg18[%c0_32, %c24] : memref<8x32xbf16, #tpu.memory_space<vmem>>, vector<8x8xbf16>
    tpu.vector_store %arg18[%c0_32, %c24], %106 {strides = array<i32>} : memref<8x32xbf16, #tpu.memory_space<vmem>>, vector<8x8xbf16>,
    %c0_33 = arith.constant 0 : index
    %c0_34 = arith.constant 0 : index
    %108 = vector.load %arg18[%c0_33, %c0_34] : memref<8x32xbf16, #tpu.memory_space<vmem>>, vector<8x32xbf16>
    %c0_35 = arith.constant 0 : index
    %c0_36 = arith.constant 0 : index
    %109 = vector.load %arg7[%c0_35, %c0_36] : memref<32x32xbf16, #tpu.memory_space<vmem>>, vector<32x32xbf16>
    %cst_37 = arith.constant dense<0.000000e+00> : vector<8x32xf32>
    %110 = tpu.matmul %108, %109, %cst_37 {dimension_numbers = #tpu.dot_dimension_numbers<[1], [0], [0], [1], [0, 0, 1, 1], [], []>} : vector<8x32xbf16>, vector<32x32xbf16>, vector<8x32xf32> -> vector<8x32xf32>
    %c0_38 = arith.constant 0 : index
    %c0_39 = arith.constant 0 : index
    %111 = vector.load %arg8[%c0_38, %c0_39] : memref<1x32xf32, #tpu.memory_space<vmem>>, vector<1x32xf32>
    %112 = vector.broadcast %111 : vector<1x32xf32> to vector<8x32xf32>
    %113 = arith.addf %110, %112 : vector<8x32xf32>
    %114 = arith.addf %0, %113 : vector<8x32xf32>
    %cst_40 = arith.constant dense<0.000000e+00> : vector<8xf32>
    %115 = vector.multi_reduction <add>, %114, %cst_40 [1] : vector<8x32xf32> to vector<8xf32>
    %116 = vector.shape_cast %115 : vector<8xf32> to vector<8x1xf32>
    %cst_41 = arith.constant 3.200000e+01 : f32
    %117 = vector.broadcast %cst_41 : f32 to vector<8x1xf32>
    %118 = arith.divf %116, %117 : vector<8x1xf32>
    %119 = vector.broadcast %118 : vector<8x1xf32> to vector<8x32xf32>
    %120 = arith.subf %114, %119 : vector<8x32xf32>
    %121 = arith.mulf %120, %120 : vector<8x32xf32>
    %cst_42 = arith.constant dense<0.000000e+00> : vector<8xf32>
    %122 = vector.multi_reduction <add>, %121, %cst_42 [1] : vector<8x32xf32> to vector<8xf32>
    %123 = vector.shape_cast %122 : vector<8xf32> to vector<8x1xf32>
    %cst_43 = arith.constant 3.200000e+01 : f32
    %124 = vector.broadcast %cst_43 : f32 to vector<8x1xf32>
    %125 = arith.divf %123, %124 : vector<8x1xf32>
    %126 = vector.broadcast %118 : vector<8x1xf32> to vector<8x32xf32>
    %127 = arith.subf %114, %126 : vector<8x32xf32>
    %cst_44 = arith.constant 9.99999974E-6 : f32
    %128 = vector.broadcast %cst_44 : f32 to vector<8x1xf32>
    %129 = arith.addf %125, %128 : vector<8x1xf32>
    %130 = math.rsqrt %129 : vector<8x1xf32>
    %131 = vector.broadcast %130 : vector<8x1xf32> to vector<8x32xf32>
    %132 = arith.mulf %127, %131 : vector<8x32xf32>
    %c0_45 = arith.constant 0 : index
    %c0_46 = arith.constant 0 : index
    %133 = vector.load %arg13[%c0_45, %c0_46] : memref<1x32xf32, #tpu.memory_space<vmem>>, vector<1x32xf32>
    %134 = vector.broadcast %133 : vector<1x32xf32> to vector<8x32xf32>
    %135 = arith.mulf %132, %134 : vector<8x32xf32>
    %c0_47 = arith.constant 0 : index
    %c0_48 = arith.constant 0 : index
    %136 = vector.load %arg14[%c0_47, %c0_48] : memref<1x32xf32, #tpu.memory_space<vmem>>, vector<1x32xf32>
    %137 = vector.broadcast %136 : vector<1x32xf32> to vector<8x32xf32>
    %138 = arith.addf %135, %137 : vector<8x32xf32>
    %139 = arith.truncf %138 : vector<8x32xf32> to vector<8x32xbf16>
    %c0_49 = arith.constant 0 : index
    %c0_50 = arith.constant 0 : index
    %140 = vector.load %arg9[%c0_49, %c0_50] : memref<32x64xbf16, #tpu.memory_space<vmem>>, vector<32x64xbf16>
    %cst_51 = arith.constant dense<0.000000e+00> : vector<8x64xf32>
    %141 = tpu.matmul %139, %140, %cst_51 {dimension_numbers = #tpu.dot_dimension_numbers<[1], [0], [0], [1], [0, 0, 1, 1], [], []>} : vector<8x32xbf16>, vector<32x64xbf16>, vector<8x64xf32> -> vector<8x64xf32>
    %c0_52 = arith.constant 0 : index
    %c0_53 = arith.constant 0 : index
    %142 = vector.load %arg10[%c0_52, %c0_53] : memref<1x64xf32, #tpu.memory_space<vmem>>, vector<1x64xf32>
    %143 = vector.broadcast %142 : vector<1x64xf32> to vector<8x64xf32>
    %144 = arith.addf %141, %143 : vector<8x64xf32>
    %cst_54 = arith.constant 0.000000e+00 : f32
    %145 = vector.broadcast %cst_54 : f32 to vector<8x64xf32>
    %146 = arith.maximumf %144, %145 : vector<8x64xf32>
    %147 = arith.truncf %146 : vector<8x64xf32> to vector<8x64xbf16>
    %c0_55 = arith.constant 0 : index
    %c0_56 = arith.constant 0 : index
    %148 = vector.load %arg11[%c0_55, %c0_56] : memref<64x32xbf16, #tpu.memory_space<vmem>>, vector<64x32xbf16>
    %cst_57 = arith.constant dense<0.000000e+00> : vector<8x32xf32>
    %149 = tpu.matmul %147, %148, %cst_57 {dimension_numbers = #tpu.dot_dimension_numbers<[1], [0], [0], [1], [0, 0, 1, 1], [], []>} : vector<8x64xbf16>, vector<64x32xbf16>, vector<8x32xf32> -> vector<8x32xf32>
    %c0_58 = arith.constant 0 : index
    %c0_59 = arith.constant 0 : index
    %150 = vector.load %arg12[%c0_58, %c0_59] : memref<1x32xf32, #tpu.memory_space<vmem>>, vector<1x32xf32>
    %151 = vector.broadcast %150 : vector<1x32xf32> to vector<8x32xf32>
    %152 = arith.addf %149, %151 : vector<8x32xf32>
    %153 = arith.addf %138, %152 : vector<8x32xf32>
    %cst_60 = arith.constant dense<0.000000e+00> : vector<8xf32>
    %154 = vector.multi_reduction <add>, %153, %cst_60 [1] : vector<8x32xf32> to vector<8xf32>
    %155 = vector.shape_cast %154 : vector<8xf32> to vector<8x1xf32>
    %cst_61 = arith.constant 3.200000e+01 : f32
    %156 = vector.broadcast %cst_61 : f32 to vector<8x1xf32>
    %157 = arith.divf %155, %156 : vector<8x1xf32>
    %158 = vector.broadcast %157 : vector<8x1xf32> to vector<8x32xf32>
    %159 = arith.subf %153, %158 : vector<8x32xf32>
    %160 = arith.mulf %159, %159 : vector<8x32xf32>
    %cst_62 = arith.constant dense<0.000000e+00> : vector<8xf32>
    %161 = vector.multi_reduction <add>, %160, %cst_62 [1] : vector<8x32xf32> to vector<8xf32>
    %162 = vector.shape_cast %161 : vector<8xf32> to vector<8x1xf32>
    %cst_63 = arith.constant 3.200000e+01 : f32
    %163 = vector.broadcast %cst_63 : f32 to vector<8x1xf32>
    %164 = arith.divf %162, %163 : vector<8x1xf32>
    %165 = vector.broadcast %157 : vector<8x1xf32> to vector<8x32xf32>
    %166 = arith.subf %153, %165 : vector<8x32xf32>
    %cst_64 = arith.constant 9.99999974E-6 : f32
    %167 = vector.broadcast %cst_64 : f32 to vector<8x1xf32>
    %168 = arith.addf %164, %167 : vector<8x1xf32>
    %169 = math.rsqrt %168 : vector<8x1xf32>
    %170 = vector.broadcast %169 : vector<8x1xf32> to vector<8x32xf32>
    %171 = arith.mulf %166, %170 : vector<8x32xf32>
    %c0_65 = arith.constant 0 : index
    %c0_66 = arith.constant 0 : index
    %172 = vector.load %arg15[%c0_65, %c0_66] : memref<1x32xf32, #tpu.memory_space<vmem>>, vector<1x32xf32>
    %173 = vector.broadcast %172 : vector<1x32xf32> to vector<8x32xf32>
    %174 = arith.mulf %171, %173 : vector<8x32xf32>
    %c0_67 = arith.constant 0 : index
    %c0_68 = arith.constant 0 : index
    %175 = vector.load %arg16[%c0_67, %c0_68] : memref<1x32xf32, #tpu.memory_space<vmem>>, vector<1x32xf32>
    %176 = vector.broadcast %175 : vector<1x32xf32> to vector<8x32xf32>
    %177 = arith.addf %174, %176 : vector<8x32xf32>
    %c0_69 = arith.constant 0 : index
    %c0_70 = arith.constant 0 : index
    %178 = vector.load %arg17[%c0_69, %c0_70] : memref<8x32xf32, #tpu.memory_space<vmem>>, vector<8x32xf32>
    tpu.vector_store %arg17[%c0_69, %c0_70], %177 {strides = array<i32>} : memref<8x32xf32, #tpu.memory_space<vmem>>, vector<8x32xf32>,
    return
  }
  func.func @transform_0(%arg0: i32) -> (i32, i32) {
    %c0_i32 = arith.constant 0 : i32
    %c0_i32_0 = arith.constant 0 : i32
    return %arg0, %c0_i32 : i32, i32
  }
  func.func @transform_1(%arg0: i32) -> (i32, i32) {
    %c0_i32 = arith.constant 0 : i32
    %c0_i32_0 = arith.constant 0 : i32
    return %arg0, %c0_i32 : i32, i32
  }
  func.func @transform_2(%arg0: i32) -> (i32, i32) {
    %c0_i32 = arith.constant 0 : i32
    %c0_i32_0 = arith.constant 0 : i32
    %c0_i32_1 = arith.constant 0 : i32
    return %c0_i32, %c0_i32_0 : i32, i32
  }
  func.func @transform_3(%arg0: i32) -> (i32, i32) {
    %c0_i32 = arith.constant 0 : i32
    %c0_i32_0 = arith.constant 0 : i32
    %c0_i32_1 = arith.constant 0 : i32
    return %c0_i32, %c0_i32_0 : i32, i32
  }
  func.func @transform_4(%arg0: i32) -> (i32, i32) {
    %c0_i32 = arith.constant 0 : i32
    %c0_i32_0 = arith.constant 0 : i32
    %c0_i32_1 = arith.constant 0 : i32
    return %c0_i32, %c0_i32_0 : i32, i32
  }
  func.func @transform_5(%arg0: i32) -> (i32, i32) {
    %c0_i32 = arith.constant 0 : i32
    %c0_i32_0 = arith.constant 0 : i32
    %c0_i32_1 = arith.constant 0 : i32
    return %c0_i32, %c0_i32_0 : i32, i32
  }
  func.func @transform_6(%arg0: i32) -> (i32, i32) {
    %c0_i32 = arith.constant 0 : i32
    %c0_i32_0 = arith.constant 0 : i32
    %c0_i32_1 = arith.constant 0 : i32
    return %c0_i32, %c0_i32_0 : i32, i32
  }
  func.func @transform_7(%arg0: i32) -> (i32, i32) {
    %c0_i32 = arith.constant 0 : i32
    %c0_i32_0 = arith.constant 0 : i32
    %c0_i32_1 = arith.constant 0 : i32
    return %c0_i32, %c0_i32_0 : i32, i32
  }
  func.func @transform_8(%arg0: i32) -> (i32, i32) {
    %c0_i32 = arith.constant 0 : i32
    %c0_i32_0 = arith.constant 0 : i32
    %c0_i32_1 = arith.constant 0 : i32
    return %c0_i32, %c0_i32_0 : i32, i32
  }
  func.func @transform_9(%arg0: i32) -> (i32, i32) {
    %c0_i32 = arith.constant 0 : i32
    %c0_i32_0 = arith.constant 0 : i32
    %c0_i32_1 = arith.constant 0 : i32
    return %c0_i32, %c0_i32_0 : i32, i32
  }
  func.func @transform_10(%arg0: i32) -> (i32, i32) {
    %c0_i32 = arith.constant 0 : i32
    %c0_i32_0 = arith.constant 0 : i32
    %c0_i32_1 = arith.constant 0 : i32
    return %c0_i32, %c0_i32_0 : i32, i32
  }
  func.func @transform_11(%arg0: i32) -> (i32, i32) {
    %c0_i32 = arith.constant 0 : i32
    %c0_i32_0 = arith.constant 0 : i32
    %c0_i32_1 = arith.constant 0 : i32
    return %c0_i32, %c0_i32_0 : i32, i32
  }
  func.func @transform_12(%arg0: i32) -> (i32, i32) {
    %c0_i32 = arith.constant 0 : i32
    %c0_i32_0 = arith.constant 0 : i32
    %c0_i32_1 = arith.constant 0 : i32
    return %c0_i32, %c0_i32_0 : i32, i32
  }
  func.func @transform_13(%arg0: i32) -> (i32, i32) {
    %c0_i32 = arith.constant 0 : i32
    %c0_i32_0 = arith.constant 0 : i32
    %c0_i32_1 = arith.constant 0 : i32
    return %c0_i32, %c0_i32_0 : i32, i32
  }
  func.func @transform_14(%arg0: i32) -> (i32, i32) {
    %c0_i32 = arith.constant 0 : i32
    %c0_i32_0 = arith.constant 0 : i32
    %c0_i32_1 = arith.constant 0 : i32
    return %c0_i32, %c0_i32_0 : i32, i32
  }
  func.func @transform_15(%arg0: i32) -> (i32, i32) {
    %c0_i32 = arith.constant 0 : i32
    %c0_i32_0 = arith.constant 0 : i32
    %c0_i32_1 = arith.constant 0 : i32
    return %c0_i32, %c0_i32_0 : i32, i32
  }
  func.func @transform_16(%arg0: i32) -> (i32, i32) {
    %c0_i32 = arith.constant 0 : i32
    %c0_i32_0 = arith.constant 0 : i32
    return %arg0, %c0_i32 : i32, i32
  }
}

</mosaic_0001>

<llo_original>
// kernel: tpu_custom_call.1
$region0: #{tpu_custom_call.1}
  #allocation0 [shape = 'u32[]', space=smem, size = 0x4, offset = 0x4, fixed_abs, tag = 'smem constant byte address 0x4 - core index']
  #allocation1 [shape = 'u32[144,128]{1,0:T(1,128)}', space=vmem, size = 0x12000, scoped, tag = 'internal scratch']
  #allocation2 [shape = 'bf16[8,32]{1,0:T(8,128)(2,1)}', space=vmem, size = 0x800, scoped, tag = 'scratch operand']
  %s0 = inlined_call_operand.vmem [shape: f32[16,32], index: 0, kind: input, shape index: {}]
  %s1 = inlined_call_operand.vmem [shape: f32[16,32], index: 1, kind: input, shape index: {}]
  %s2 = inlined_call_operand.vmem [shape: bf16[32,64], index: 2, kind: input, shape index: {}]
  %s3 = inlined_call_operand.vmem [shape: f32[1,64], index: 3, kind: input, shape index: {}]
  %s4 = inlined_call_operand.hbm [shape: bf16[32,32], index: 4, kind: input, shape index: {}]
  %s5 = inlined_call_operand.vmem [shape: f32[1,32], index: 5, kind: input, shape index: {}]
  %s6 = inlined_call_operand.hbm [shape: bf16[32,32], index: 6, kind: input, shape index: {}]
  %s7 = inlined_call_operand.vmem [shape: f32[1,32], index: 7, kind: input, shape index: {}]
  %s8 = inlined_call_operand.hbm [shape: bf16[32,64], index: 8, kind: input, shape index: {}]
  %s9 = inlined_call_operand.vmem [shape: f32[1,64], index: 9, kind: input, shape index: {}]
  %s10 = inlined_call_operand.vmem [shape: bf16[64,32], index: 10, kind: input, shape index: {}]
  %s11 = inlined_call_operand.vmem [shape: f32[1,32], index: 11, kind: input, shape index: {}]
  %s12 = inlined_call_operand.vmem [shape: f32[1,32], index: 12, kind: input, shape index: {}]
  %s13 = inlined_call_operand.vmem [shape: f32[1,32], index: 13, kind: input, shape index: {}]
  %s14 = inlined_call_operand.vmem [shape: f32[1,32], index: 14, kind: input, shape index: {}]
  %s15 = inlined_call_operand.vmem [shape: f32[1,32], index: 15, kind: input, shape index: {}]
  %s16 = inlined_call_operand.hbm [shape: f32[16,32], index: 16, kind: output, shape index: {}]
  %s17 = sld [smem:[#allocation0]]
  $region109: #{tpu_custom_call.1} parent=0
    _
  %s19 = ssub.s32 1, %s17
  %s20 = scalar_select 0, %s19, %s17
  $region1: #{tpu_custom_call.1} parent=0
    #allocation3 [shape = 'u8[8192]{0}', space=vmem, size = 0x2000, scoped, tag = 'input window, operand 4, single buffered']
    #allocation4 [shape = 's32[2]{0}', space=sflag, size = 0x8, scoped, tag = 'scoped memory for tpu_custom_call.1']
    #allocation5 [shape = 's32[2]{0}', space=sflag, size = 0x8, scoped, tag = 'scoped memory for tpu_custom_call.1']
    #allocation6 [shape = 'u8[8192]{0}', space=vmem, size = 0x2000, scoped, tag = 'input window, operand 6, single buffered']
    #allocation7 [shape = 's32[1]{0}', space=sflag, size = 0x4, scoped, tag = 'scoped memory for tpu_custom_call.1']
    #allocation8 [shape = 'u8[8192]{0}', space=vmem, size = 0x2000, scoped, tag = 'input window, operand 8, single buffered']
    #allocation9 [shape = 'u8[8192]{0}', space=vmem, size = 0x2000, scoped, tag = 'output window, operand 0']
    %21 = vsyncpa [#allocation4], 0
    %22 = vsyncpa [#allocation7], 0
    %23 = vsyncpa [#allocation5], 0
    %s24 = scalar_lea.sflag [#allocation5], 1
    %25 = vsyncpa %s24, 0
    loop: start=0, step=1, limit=4
    $region2: #{tpu_custom_call.1} parent=1 // loop_pre_header
      _
    $region3: #{tpu_custom_call.1} parent=1 // loop_header
      %s27 = sphi 0, %s31
      %p28 = scmp.ge.s32.totalorder %s27, 4
      %s37 = sphi 0, %s39
      %s40 = sphi 0, %s37
      %s41 = sphi 0, %s40
      %s57 = sphi 0, %s41
      %s63 = sphi 0, %s65
      %s66 = sphi 0, %s63
      %s67 = sphi 0, %s66
      %s83 = sphi 0, %s67
      %s87 = sphi 0, %s87
      %s89 = sphi 0, %s87
      %s90 = sphi 0, %s89
      %s104 = sphi 0, %s90
      %s108 = sphi 0, %s108
      %s110 = sphi 0, %s108
      %s111 = sphi 0, %s110
      %s125 = sphi 0, %s111
      %s129 = sphi 0, %s129
      %s131 = sphi 0, %s129
      %s132 = sphi 0, %s131
      %s146 = sphi 0, %s132
      %s150 = sphi 0, %s150
      %s152 = sphi 0, %s150
      %s153 = sphi 0, %s152
      %s167 = sphi 0, %s153
      %s171 = sphi 0, %s171
      %s173 = sphi 0, %s171
      %s174 = sphi 0, %s173
      %s188 = sphi 0, %s174
      %s192 = sphi 0, %s192
      %s194 = sphi 0, %s192
      %s195 = sphi 0, %s194
      %s209 = sphi 0, %s195
      %s213 = sphi 0, %s213
      %s215 = sphi 0, %s213
      %s216 = sphi 0, %s215
      %s230 = sphi 0, %s216
      %s234 = sphi 0, %s234
      %s236 = sphi 0, %s234
      %s237 = sphi 0, %s236
      %s251 = sphi 0, %s237
      %s255 = sphi 0, %s255
      %s257 = sphi 0, %s255
      %s258 = sphi 0, %s257
      %s272 = sphi 0, %s258
      %s276 = sphi 0, %s276
      %s278 = sphi 0, %s276
      %s279 = sphi 0, %s278
      %s293 = sphi 0, %s279
      %s297 = sphi 0, %s297
      %s299 = sphi 0, %s297
      %s300 = sphi 0, %s299
      %s314 = sphi 0, %s300
      %s318 = sphi 0, %s318
      %s320 = sphi 0, %s318
      %s321 = sphi 0, %s320
      %s335 = sphi 0, %s321
      %s339 = sphi 0, %s339
      %s341 = sphi 0, %s339
      %s342 = sphi 0, %s341
      %s356 = sphi 0, %s342
      %s360 = sphi 0, %s360
      %s362 = sphi 0, %s360
      %s363 = sphi 0, %s362
      %s377 = sphi 0, %s363
      %s383 = sphi 0, %s385
      %s386 = sphi 0, %s383
      %s387 = sphi 0, %s386
      %s403 = sphi 0, %s387
    $region4: #{tpu_custom_call.1} parent=1 // loop_header_branch
      %30 = sbr.rel (%p28) target = $region8
    $region5: #{tpu_custom_call.1} parent=1 // loop_body
      %s32 = ssub.s32 %s27, 1
      %s33 = ssub.s32 %s27, 2
      %s34 = sadd.s32 %s27, 1
      %s35 = ssub.s32 %s27, %s34
      %p36 = scmp.eq.s32.totalorder %s35, 0
      %s38 = sadd.s32 %s37, 1
      %s39 = scalar_select %p36, %s37, %s38
      %p42 = pneg %p36
      %p43 = scmp.eq.s32.totalorder %s27, 1
      %p44 = por %p42, %p43
      %p45 = scmp.ne.s32.totalorder %s37, %s40
      %p46 = scmp.eq.s32.totalorder %s27, 0
      %p47 = por %p45, %p46
      %p48 = scmp.ne.s32.totalorder %s37, %s40
      %p49 = scmp.eq.s32.totalorder %s32, 1
      %p50 = por %p48, %p49
      %p51 = scmp.ne.s32.totalorder %s40, %s41
      %p52 = scmp.eq.s32.totalorder %s32, 0
      %p53 = por %p51, %p52
      %p54 = scmp.ne.s32.totalorder %s40, %s41
      %p55 = scmp.eq.s32.totalorder %s33, 1
      %p56 = por %p54, %p55
      %p58 = scmp.ne.s32.totalorder %s41, %s57
      %p59 = scmp.eq.s32.totalorder %s33, 0
      %p60 = por %p58, %p59
      %s61 = ssub.s32 %s27, %s34
      %p62 = scmp.eq.s32.totalorder %s61, 0
      %s64 = sadd.s32 %s63, 1
      %s65 = scalar_select %p62, %s63, %s64
      %p68 = pneg %p62
      %p69 = scmp.eq.s32.totalorder %s27, 1
      %p70 = por %p68, %p69
      %p71 = scmp.ne.s32.totalorder %s63, %s66
      %p72 = scmp.eq.s32.totalorder %s27, 0
      %p73 = por %p71, %p72
      %p74 = scmp.ne.s32.totalorder %s63, %s66
      %p75 = scmp.eq.s32.totalorder %s32, 1
      %p76 = por %p74, %p75
      %p77 = scmp.ne.s32.totalorder %s66, %s67
      %p78 = scmp.eq.s32.totalorder %s32, 0
      %p79 = por %p77, %p78
      %p80 = scmp.ne.s32.totalorder %s66, %s67
      %p81 = scmp.eq.s32.totalorder %s33, 1
      %p82 = por %p80, %p81
      %p84 = scmp.ne.s32.totalorder %s67, %s83
      %p85 = scmp.eq.s32.totalorder %s33, 0
      %p86 = por %p84, %p85
      %s88 = sadd.s32 %s87, 1
      %p91 = scmp.eq.s32.totalorder %s27, 1
      %p92 = scmp.ne.s32.totalorder %s87, %s89
      %p93 = scmp.eq.s32.totalorder %s27, 0
      %p94 = por %p92, %p93
      %p95 = scmp.ne.s32.totalorder %s87, %s89
      %p96 = scmp.eq.s32.totalorder %s32, 1
      %p97 = por %p95, %p96
      %p98 = scmp.ne.s32.totalorder %s89, %s90
      %p99 = scmp.eq.s32.totalorder %s32, 0
      %p100 = por %p98, %p99
      %p101 = scmp.ne.s32.totalorder %s89, %s90
      %p102 = scmp.eq.s32.totalorder %s33, 1
      %p103 = por %p101, %p102
      %p105 = scmp.ne.s32.totalorder %s90, %s104
      %p106 = scmp.eq.s32.totalorder %s33, 0
      %p107 = por %p105, %p106
      %s109 = sadd.s32 %s108, 1
      %p112 = scmp.eq.s32.totalorder %s27, 1
      %p113 = scmp.ne.s32.totalorder %s108, %s110
      %p114 = scmp.eq.s32.totalorder %s27, 0
      %p115 = por %p113, %p114
      %p116 = scmp.ne.s32.totalorder %s108, %s110
      %p117 = scmp.eq.s32.totalorder %s32, 1
      %p118 = por %p116, %p117
      %p119 = scmp.ne.s32.totalorder %s110, %s111
      %p120 = scmp.eq.s32.totalorder %s32, 0
      %p121 = por %p119, %p120
      %p122 = scmp.ne.s32.totalorder %s110, %s111
      %p123 = scmp.eq.s32.totalorder %s33, 1
      %p124 = por %p122, %p123
      %p126 = scmp.ne.s32.totalorder %s111, %s125
      %p127 = scmp.eq.s32.totalorder %s33, 0
      %p128 = por %p126, %p127
      %s130 = sadd.s32 %s129, 1
      %p133 = scmp.eq.s32.totalorder %s27, 1
      %p134 = scmp.ne.s32.totalorder %s129, %s131
      %p135 = scmp.eq.s32.totalorder %s27, 0
      %p136 = por %p134, %p135
      %p137 = scmp.ne.s32.totalorder %s129, %s131
      %p138 = scmp.eq.s32.totalorder %s32, 1
      %p139 = por %p137, %p138
      %p140 = scmp.ne.s32.totalorder %s131, %s132
      %p141 = scmp.eq.s32.totalorder %s32, 0
      %p142 = por %p140, %p141
      %p143 = scmp.ne.s32.totalorder %s131, %s132
      %p144 = scmp.eq.s32.totalorder %s33, 1
      %p145 = por %p143, %p144
      %p147 = scmp.ne.s32.totalorder %s132, %s146
      %p148 = scmp.eq.s32.totalorder %s33, 0
      %p149 = por %p147, %p148
      %s151 = sadd.s32 %s150, 1
      %p154 = scmp.eq.s32.totalorder %s27, 1
      %p155 = scmp.ne.s32.totalorder %s150, %s152
      %p156 = scmp.eq.s32.totalorder %s27, 0
      %p157 = por %p155, %p156
      %p158 = scmp.ne.s32.totalorder %s150, %s152
      %p159 = scmp.eq.s32.totalorder %s32, 1
      %p160 = por %p158, %p159
      %p161 = scmp.ne.s32.totalorder %s152, %s153
      %p162 = scmp.eq.s32.totalorder %s32, 0
      %p163 = por %p161, %p162
      %p164 = scmp.ne.s32.totalorder %s152, %s153
      %p165 = scmp.eq.s32.totalorder %s33, 1
      %p166 = por %p164, %p165
      %p168 = scmp.ne.s32.totalorder %s153, %s167
      %p169 = scmp.eq.s32.totalorder %s33, 0
      %p170 = por %p168, %p169
      %s172 = sadd.s32 %s171, 1
      %p175 = scmp.eq.s32.totalorder %s27, 1
      %p176 = scmp.ne.s32.totalorder %s171, %s173
      %p177 = scmp.eq.s32.totalorder %s27, 0
      %p178 = por %p176, %p177
      %p179 = scmp.ne.s32.totalorder %s171, %s173
      %p180 = scmp.eq.s32.totalorder %s32, 1
      %p181 = por %p179, %p180
      %p182 = scmp.ne.s32.totalorder %s173, %s174
      %p183 = scmp.eq.s32.totalorder %s32, 0
      %p184 = por %p182, %p183
      %p185 = scmp.ne.s32.totalorder %s173, %s174
      %p186 = scmp.eq.s32.totalorder %s33, 1
      %p187 = por %p185, %p186
      %p189 = scmp.ne.s32.totalorder %s174, %s188
      %p190 = scmp.eq.s32.totalorder %s33, 0
      %p191 = por %p189, %p190
      %s193 = sadd.s32 %s192, 1
      %p196 = scmp.eq.s32.totalorder %s27, 1
      %p197 = scmp.ne.s32.totalorder %s192, %s194
      %p198 = scmp.eq.s32.totalorder %s27, 0
      %p199 = por %p197, %p198
      %p200 = scmp.ne.s32.totalorder %s192, %s194
      %p201 = scmp.eq.s32.totalorder %s32, 1
      %p202 = por %p200, %p201
      %p203 = scmp.ne.s32.totalorder %s194, %s195
      %p204 = scmp.eq.s32.totalorder %s32, 0
      %p205 = por %p203, %p204
      %p206 = scmp.ne.s32.totalorder %s194, %s195
      %p207 = scmp.eq.s32.totalorder %s33, 1
      %p208 = por %p206, %p207
      %p210 = scmp.ne.s32.totalorder %s195, %s209
      %p211 = scmp.eq.s32.totalorder %s33, 0
      %p212 = por %p210, %p211
      %s214 = sadd.s32 %s213, 1
      %p217 = scmp.eq.s32.totalorder %s27, 1
      %p218 = scmp.ne.s32.totalorder %s213, %s215
      %p219 = scmp.eq.s32.totalorder %s27, 0
      %p220 = por %p218, %p219
      %p221 = scmp.ne.s32.totalorder %s213, %s215
      %p222 = scmp.eq.s32.totalorder %s32, 1
      %p223 = por %p221, %p222
      %p224 = scmp.ne.s32.totalorder %s215, %s216
      %p225 = scmp.eq.s32.totalorder %s32, 0
      %p226 = por %p224, %p225
      %p227 = scmp.ne.s32.totalorder %s215, %s216
      %p228 = scmp.eq.s32.totalorder %s33, 1
      %p229 = por %p227, %p228
      %p231 = scmp.ne.s32.totalorder %s216, %s230
      %p232 = scmp.eq.s32.totalorder %s33, 0
      %p233 = por %p231, %p232
      %s235 = sadd.s32 %s234, 1
      %p238 = scmp.eq.s32.totalorder %s27, 1
      %p239 = scmp.ne.s32.totalorder %s234, %s236
      %p240 = scmp.eq.s32.totalorder %s27, 0
      %p241 = por %p239, %p240
      %p242 = scmp.ne.s32.totalorder %s234, %s236
      %p243 = scmp.eq.s32.totalorder %s32, 1
      %p244 = por %p242, %p243
      %p245 = scmp.ne.s32.totalorder %s236, %s237
      %p246 = scmp.eq.s32.totalorder %s32, 0
      %p247 = por %p245, %p246
      %p248 = scmp.ne.s32.totalorder %s236, %s237
      %p249 = scmp.eq.s32.totalorder %s33, 1
      %p250 = por %p248, %p249
      %p252 = scmp.ne.s32.totalorder %s237, %s251
      %p253 = scmp.eq.s32.totalorder %s33, 0
      %p254 = por %p252, %p253
      %s256 = sadd.s32 %s255, 1
      %p259 = scmp.eq.s32.totalorder %s27, 1
      %p260 = scmp.ne.s32.totalorder %s255, %s257
      %p261 = scmp.eq.s32.totalorder %s27, 0
      %p262 = por %p260, %p261
      %p263 = scmp.ne.s32.totalorder %s255, %s257
      %p264 = scmp.eq.s32.totalorder %s32, 1
      %p265 = por %p263, %p264
      %p266 = scmp.ne.s32.totalorder %s257, %s258
      %p267 = scmp.eq.s32.totalorder %s32, 0
      %p268 = por %p266, %p267
      %p269 = scmp.ne.s32.totalorder %s257, %s258
      %p270 = scmp.eq.s32.totalorder %s33, 1
      %p271 = por %p269, %p270
      %p273 = scmp.ne.s32.totalorder %s258, %s272
      %p274 = scmp.eq.s32.totalorder %s33, 0
      %p275 = por %p273, %p274
      %s277 = sadd.s32 %s276, 1
      %p280 = scmp.eq.s32.totalorder %s27, 1
      %p281 = scmp.ne.s32.totalorder %s276, %s278
      %p282 = scmp.eq.s32.totalorder %s27, 0
      %p283 = por %p281, %p282
      %p284 = scmp.ne.s32.totalorder %s276, %s278
      %p285 = scmp.eq.s32.totalorder %s32, 1
      %p286 = por %p284, %p285
      %p287 = scmp.ne.s32.totalorder %s278, %s279
      %p288 = scmp.eq.s32.totalorder %s32, 0
      %p289 = por %p287, %p288
      %p290 = scmp.ne.s32.totalorder %s278, %s279
      %p291 = scmp.eq.s32.totalorder %s33, 1
      %p292 = por %p290, %p291
      %p294 = scmp.ne.s32.totalorder %s279, %s293
      %p295 = scmp.eq.s32.totalorder %s33, 0
      %p296 = por %p294, %p295
      %s298 = sadd.s32 %s297, 1
      %p301 = scmp.eq.s32.totalorder %s27, 1
      %p302 = scmp.ne.s32.totalorder %s297, %s299
      %p303 = scmp.eq.s32.totalorder %s27, 0
      %p304 = por %p302, %p303
      %p305 = scmp.ne.s32.totalorder %s297, %s299
      %p306 = scmp.eq.s32.totalorder %s32, 1
      %p307 = por %p305, %p306
      %p308 = scmp.ne.s32.totalorder %s299, %s300
      %p309 = scmp.eq.s32.totalorder %s32, 0
      %p310 = por %p308, %p309
      %p311 = scmp.ne.s32.totalorder %s299, %s300
      %p312 = scmp.eq.s32.totalorder %s33, 1
      %p313 = por %p311, %p312
      %p315 = scmp.ne.s32.totalorder %s300, %s314
      %p316 = scmp.eq.s32.totalorder %s33, 0
      %p317 = por %p315, %p316
      %s319 = sadd.s32 %s318, 1
      %p322 = scmp.eq.s32.totalorder %s27, 1
      %p323 = scmp.ne.s32.totalorder %s318, %s320
      %p324 = scmp.eq.s32.totalorder %s27, 0
      %p325 = por %p323, %p324
      %p326 = scmp.ne.s32.totalorder %s318, %s320
      %p327 = scmp.eq.s32.totalorder %s32, 1
      %p328 = por %p326, %p327
      %p329 = scmp.ne.s32.totalorder %s320, %s321
      %p330 = scmp.eq.s32.totalorder %s32, 0
      %p331 = por %p329, %p330
      %p332 = scmp.ne.s32.totalorder %s320, %s321
      %p333 = scmp.eq.s32.totalorder %s33, 1
      %p334 = por %p332, %p333
      %p336 = scmp.ne.s32.totalorder %s321, %s335
      %p337 = scmp.eq.s32.totalorder %s33, 0
      %p338 = por %p336, %p337
      %s340 = sadd.s32 %s339, 1
      %p343 = scmp.eq.s32.totalorder %s27, 1
      %p344 = scmp.ne.s32.totalorder %s339, %s341
      %p345 = scmp.eq.s32.totalorder %s27, 0
      %p346 = por %p344, %p345
      %p347 = scmp.ne.s32.totalorder %s339, %s341
      %p348 = scmp.eq.s32.totalorder %s32, 1
      %p349 = por %p347, %p348
      %p350 = scmp.ne.s32.totalorder %s341, %s342
      %p351 = scmp.eq.s32.totalorder %s32, 0
      %p352 = por %p350, %p351
      %p353 = scmp.ne.s32.totalorder %s341, %s342
      %p354 = scmp.eq.s32.totalorder %s33, 1
      %p355 = por %p353, %p354
      %p357 = scmp.ne.s32.totalorder %s342, %s356
      %p358 = scmp.eq.s32.totalorder %s33, 0
      %p359 = por %p357, %p358
      %s361 = sadd.s32 %s360, 1
      %p364 = scmp.eq.s32.totalorder %s27, 1
      %p365 = scmp.ne.s32.totalorder %s360, %s362
      %p366 = scmp.eq.s32.totalorder %s27, 0
      %p367 = por %p365, %p366
      %p368 = scmp.ne.s32.totalorder %s360, %s362
      %p369 = scmp.eq.s32.totalorder %s32, 1
      %p370 = por %p368, %p369
      %p371 = scmp.ne.s32.totalorder %s362, %s363
      %p372 = scmp.eq.s32.totalorder %s32, 0
      %p373 = por %p371, %p372
      %p374 = scmp.ne.s32.totalorder %s362, %s363
      %p375 = scmp.eq.s32.totalorder %s33, 1
      %p376 = por %p374, %p375
      %p378 = scmp.ne.s32.totalorder %s363, %s377
      %p379 = scmp.eq.s32.totalorder %s33, 0
      %p380 = por %p378, %p379
      %s381 = ssub.s32 %s27, %s34
      %p382 = scmp.eq.s32.totalorder %s381, 0
      %s384 = sadd.s32 %s383, 1
      %s385 = scalar_select %p382, %s383, %s384
      %p388 = pneg %p382
      %p389 = scmp.eq.s32.totalorder %s27, 1
      %p390 = por %p388, %p389
      %p391 = scmp.ne.s32.totalorder %s383, %s386
      %p392 = scmp.eq.s32.totalorder %s27, 0
      %p393 = por %p391, %p392
      %p394 = scmp.ne.s32.totalorder %s383, %s386
      %p395 = scmp.eq.s32.totalorder %s32, 1
      %p396 = por %p394, %p395
      %p397 = scmp.ne.s32.totalorder %s386, %s387
      %p398 = scmp.eq.s32.totalorder %s32, 0
      %p399 = por %p397, %p398
      %p400 = scmp.ne.s32.totalorder %s386, %s387
      %p401 = scmp.eq.s32.totalorder %s33, 1
      %p402 = por %p400, %p401
      %p404 = scmp.ne.s32.totalorder %s387, %s403
      %p405 = scmp.eq.s32.totalorder %s33, 0
      %p406 = por %p404, %p405
      %p407 = scmp.le.s32.totalorder 1, %s27
      %p408 = scmp.lt.s32.totalorder %s27, 3
      %p409 = pnand %p407, %p408
      %p410 = pneg %p409
      // Predicated region
      $region9: #{tpu_custom_call.1} parent=5 // pred_check
        _
      $region10: #{tpu_custom_call.1} parent=5 // pred_check_branch
        %412 = sbr.rel (%p409) target = $region12
      $region11: #{tpu_custom_call.1} parent=5 // pred_region
        %s413 = ssub.s32 %s27, 1
        // Predicated region
        $region13: #{tpu_custom_call.1} parent=11 // pred_check
          %p414 = pneg %p100
        $region14: #{tpu_custom_call.1} parent=11 // pred_check_branch
          %416 = sbr.rel (%p414) target = $region16
        $region15: #{tpu_custom_call.1} parent=11 // pred_region
          _
        $region16: #{tpu_custom_call.1} parent=11 // pred_fallthru
          _
        // Predicated region
        $region17: #{tpu_custom_call.1} parent=11 // pred_check
          %p417 = pneg %p121
        $region18: #{tpu_custom_call.1} parent=11 // pred_check_branch
          %419 = sbr.rel (%p417) target = $region20
        $region19: #{tpu_custom_call.1} parent=11 // pred_region
          _
        $region20: #{tpu_custom_call.1} parent=11 // pred_fallthru
          _
        // Predicated region
        $region21: #{tpu_custom_call.1} parent=11 // pred_check
          %p420 = pneg %p142
        $region22: #{tpu_custom_call.1} parent=11 // pred_check_branch
          %422 = sbr.rel (%p420) target = $region24
        $region23: #{tpu_custom_call.1} parent=11 // pred_region
          %s424 = ssub.s32 256, 256
          %425 = vsyncadd [#allocation4], %s424
          %s426 = sshll.u32 [#allocation3], 4
          %s427 = int_to_ptr.vmem [resolvable:$true] %s426
          %432 = dma.hbm_to_vmem [thread:$0]  %s4, 256, %s427, [#allocation4], 64, 64, 4
        $region24: #{tpu_custom_call.1} parent=11 // pred_fallthru
          _
        // Predicated region
        $region25: #{tpu_custom_call.1} parent=11 // pred_check
          %p433 = pneg %p163
        $region26: #{tpu_custom_call.1} parent=11 // pred_check_branch
          %435 = sbr.rel (%p433) target = $region28
        $region27: #{tpu_custom_call.1} parent=11 // pred_region
          _
        $region28: #{tpu_custom_call.1} parent=11 // pred_fallthru
          _
        // Predicated region
        $region29: #{tpu_custom_call.1} parent=11 // pred_check
          %p436 = pneg %p184
        $region30: #{tpu_custom_call.1} parent=11 // pred_check_branch
          %438 = sbr.rel (%p436) target = $region32
        $region31: #{tpu_custom_call.1} parent=11 // pred_region
          %s440 = ssub.s32 256, 256
          %441 = vsyncadd [#allocation7], %s440
          %s442 = sshll.u32 [#allocation6], 4
          %s443 = int_to_ptr.vmem [resolvable:$true] %s442
          %448 = dma.hbm_to_vmem [thread:$0]  %s6, 256, %s443, [#allocation7], 64, 64, 4
        $region32: #{tpu_custom_call.1} parent=11 // pred_fallthru
          _
        // Predicated region
        $region33: #{tpu_custom_call.1} parent=11 // pred_check
          %p449 = pneg %p205
        $region34: #{tpu_custom_call.1} parent=11 // pred_check_branch
          %451 = sbr.rel (%p449) target = $region36
        $region35: #{tpu_custom_call.1} parent=11 // pred_region
          _
        $region36: #{tpu_custom_call.1} parent=11 // pred_fallthru
          _
        // Predicated region
        $region37: #{tpu_custom_call.1} parent=11 // pred_check
          %p452 = pneg %p226
        $region38: #{tpu_custom_call.1} parent=11 // pred_check_branch
          %454 = sbr.rel (%p452) target = $region40
        $region39: #{tpu_custom_call.1} parent=11 // pred_region
          %s456 = ssub.s32 256, 256
          %457 = vsyncadd [#allocation7], %s456
          %s458 = sshll.u32 [#allocation8], 4
          %s459 = int_to_ptr.vmem [resolvable:$true] %s458
          %464 = dma.hbm_to_vmem [thread:$0]  %s8, 256, %s459, [#allocation7], 64, 64, 4
        $region40: #{tpu_custom_call.1} parent=11 // pred_fallthru
          _
        // Predicated region
        $region41: #{tpu_custom_call.1} parent=11 // pred_check
          %p465 = pneg %p247
        $region42: #{tpu_custom_call.1} parent=11 // pred_check_branch
          %467 = sbr.rel (%p465) target = $region44
        $region43: #{tpu_custom_call.1} parent=11 // pred_region
          _
        $region44: #{tpu_custom_call.1} parent=11 // pred_fallthru
          _
        // Predicated region
        $region45: #{tpu_custom_call.1} parent=11 // pred_check
          %p468 = pneg %p268
        $region46: #{tpu_custom_call.1} parent=11 // pred_check_branch
          %470 = sbr.rel (%p468) target = $region48
        $region47: #{tpu_custom_call.1} parent=11 // pred_region
          _
        $region48: #{tpu_custom_call.1} parent=11 // pred_fallthru
          _
        // Predicated region
        $region49: #{tpu_custom_call.1} parent=11 // pred_check
          %p471 = pneg %p289
        $region50: #{tpu_custom_call.1} parent=11 // pred_check_branch
          %473 = sbr.rel (%p471) target = $region52
        $region51: #{tpu_custom_call.1} parent=11 // pred_region
          _
        $region52: #{tpu_custom_call.1} parent=11 // pred_fallthru
          _
        // Predicated region
        $region53: #{tpu_custom_call.1} parent=11 // pred_check
          %p474 = pneg %p310
        $region54: #{tpu_custom_call.1} parent=11 // pred_check_branch
          %476 = sbr.rel (%p474) target = $region56
        $region55: #{tpu_custom_call.1} parent=11 // pred_region
          _
        $region56: #{tpu_custom_call.1} parent=11 // pred_fallthru
          _
        // Predicated region
        $region57: #{tpu_custom_call.1} parent=11 // pred_check
          %p477 = pneg %p331
        $region58: #{tpu_custom_call.1} parent=11 // pred_check_branch
          %479 = sbr.rel (%p477) target = $region60
        $region59: #{tpu_custom_call.1} parent=11 // pred_region
          _
        $region60: #{tpu_custom_call.1} parent=11 // pred_fallthru
          _
        // Predicated region
        $region61: #{tpu_custom_call.1} parent=11 // pred_check
          %p480 = pneg %p352
        $region62: #{tpu_custom_call.1} parent=11 // pred_check_branch
          %482 = sbr.rel (%p480) target = $region64
        $region63: #{tpu_custom_call.1} parent=11 // pred_region
          _
        $region64: #{tpu_custom_call.1} parent=11 // pred_fallthru
          _
        // Predicated region
        $region65: #{tpu_custom_call.1} parent=11 // pred_check
          %p483 = pneg %p373
        $region66: #{tpu_custom_call.1} parent=11 // pred_check_branch
          %485 = sbr.rel (%p483) target = $region68
        $region67: #{tpu_custom_call.1} parent=11 // pred_region
          _
        $region68: #{tpu_custom_call.1} parent=11 // pred_fallthru
          _
      $region12: #{tpu_custom_call.1} parent=5 // pred_fallthru
        _
      %p486 = scmp.lt.s32.totalorder %s27, 2
      // Predicated region
      $region69: #{tpu_custom_call.1} parent=5 // pred_check
        %p487 = pneg %p486
      $region70: #{tpu_custom_call.1} parent=5 // pred_check_branch
        %489 = sbr.rel (%p487) target = $region72
      $region71: #{tpu_custom_call.1} parent=5 // pred_region
        // Predicated region
        $region73: #{tpu_custom_call.1} parent=71 // pred_check
          %p490 = pneg %p47
        $region74: #{tpu_custom_call.1} parent=71 // pred_check_branch
          %492 = sbr.rel (%p490) target = $region76
        $region75: #{tpu_custom_call.1} parent=71 // pred_region
          %p493 = scmp.lt.s32.totalorder %s27, 1
          %s494 = scalar_select %p493, %s27, 1
          %s495 = smul.addr %s494, 8
          %s496 = scalar_lea.vmem %s0, %s495
        $region76: #{tpu_custom_call.1} parent=71 // pred_fallthru
          _
        // Predicated region
        $region77: #{tpu_custom_call.1} parent=71 // pred_check
          %p497 = pneg %p73
        $region78: #{tpu_custom_call.1} parent=71 // pred_check_branch
          %499 = sbr.rel (%p497) target = $region80
        $region79: #{tpu_custom_call.1} parent=71 // pred_region
          %p500 = scmp.lt.s32.totalorder %s27, 1
          %s501 = scalar_select %p500, %s27, 1
          %s502 = smul.addr %s501, 8
          %s503 = scalar_lea.vmem %s1, %s502
        $region80: #{tpu_custom_call.1} parent=71 // pred_fallthru
          _
      $region72: #{tpu_custom_call.1} parent=5 // pred_fallthru
        _
      %p504 = scmp.le.s32.totalorder 1, %s27
      %p505 = scmp.lt.s32.totalorder %s27, 3
      %p506 = pnand %p504, %p505
      %p507 = pneg %p506
      // Predicated region
      $region81: #{tpu_custom_call.1} parent=5 // pred_check
        _
      $region82: #{tpu_custom_call.1} parent=5 // pred_check_branch
        %509 = sbr.rel (%p506) target = $region84
      $region83: #{tpu_custom_call.1} parent=5 // pred_region
        %s510 = ssub.s32 %s27, 1
        // Predicated region
        $region85: #{tpu_custom_call.1} parent=83 // pred_check
          %p511 = pneg %p142
        $region86: #{tpu_custom_call.1} parent=83 // pred_check_branch
          %513 = sbr.rel (%p511) target = $region88
        $region87: #{tpu_custom_call.1} parent=83 // pred_region
          %514 = dma.done [#allocation4], 256
        $region88: #{tpu_custom_call.1} parent=83 // pred_fallthru
          _
        // Predicated region
        $region89: #{tpu_custom_call.1} parent=83 // pred_check
          %p515 = pneg %p184
        $region90: #{tpu_custom_call.1} parent=83 // pred_check_branch
          %517 = sbr.rel (%p515) target = $region92
        $region91: #{tpu_custom_call.1} parent=83 // pred_region
          %518 = dma.done [#allocation7], 256
        $region92: #{tpu_custom_call.1} parent=83 // pred_fallthru
          _
        // Predicated region
        $region93: #{tpu_custom_call.1} parent=83 // pred_check
          %p519 = pneg %p226
        $region94: #{tpu_custom_call.1} parent=83 // pred_check_branch
          %521 = sbr.rel (%p519) target = $region96
        $region95: #{tpu_custom_call.1} parent=83 // pred_region
          %522 = dma.done [#allocation7], 256
        $region96: #{tpu_custom_call.1} parent=83 // pred_fallthru
          _
        %p523 = scmp.lt.s32.totalorder %s32, 1
        %s524 = scalar_select %p523, %s32, 1
        %s525 = smul.addr %s524, 8
        %s526 = scalar_lea.vmem %s0, %s525
        %p527 = pneg %p53
        %p528 = pneg %p50
        %p529 = scmp.lt.s32.totalorder %s32, 1
        %s530 = scalar_select %p529, %s32, 1
        %s531 = smul.addr %s530, 8
        %s532 = scalar_lea.vmem %s1, %s531
        %p533 = pneg %p79
        %p534 = pneg %p76
        %p535 = pneg %p100
        %p536 = pneg %p97
        %p537 = pneg %p121
        %p538 = pneg %p118
        %p539 = pneg %p142
        %p540 = pneg %p139
        %p541 = pneg %p163
        %p542 = pneg %p160
        %p543 = pneg %p184
        %p544 = pneg %p181
        %p545 = pneg %p205
        %p546 = pneg %p202
        %p547 = pneg %p226
        %p548 = pneg %p223
        %p549 = pneg %p247
        %p550 = pneg %p244
        %p551 = pneg %p268
        %p552 = pneg %p265
        %p553 = pneg %p289
        %p554 = pneg %p286
        %p555 = pneg %p310
        %p556 = pneg %p307
        %p557 = pneg %p331
        %p558 = pneg %p328
        %p559 = pneg %p352
        %p560 = pneg %p349
        %p561 = pneg %p373
        %p562 = pneg %p370
        %p563 = pneg %p399
        %p564 = pneg %p396
        %s565 = sand.u32 %s386, 1
        %s566 = scalar_lea.sflag [#allocation5], %s565
        %s567 = sand.u32 %s386, 1
        %s568 = smul.addr %s567, 8
        %s569 = scalar_lea.vmem [#allocation9], %s568
        %p570 = scmp.lt.s32.totalorder %s32, 1
        %s571 = scalar_select %p570, %s32, 1
        %s572 = smul.addr %s571, 8
        %s573 = scalar_lea.vmem %s0, %s572
        %p574 = scmp.lt.s32.totalorder %s32, 1
        %s575 = scalar_select %p574, %s32, 1
        %s576 = smul.addr %s575, 8
        %s577 = scalar_lea.vmem %s1, %s576
        %v579 = vld [vmem:[%s573] sm:$0xff]
        %v580 = vld [vmem:[%s577] sm:$0xff]
        %v581 = vadd.f32 %v579, %v580
        %v582 = vpack.c.bf16 %v581, %v581
        %v583 = vld [vmem:[%s2] sm:$0xf]
        %v584 = vld [vmem:[%s2 + $0x4] sm:$0xf]
        %v585 = vld [vmem:[%s2 + $0x8] sm:$0xf]
        %v586 = vld [vmem:[%s2 + $0xc] sm:$0xf]
        %v587 = vld [vmem:[%s3] sm:$0x1]
        %v589 = vlaneseq
        %v590 = vshrl.u32 %v589, 7
        %v591 = vsub.s32 0, %v590
        %v592 = vrot.slane %v587, %v591
        %v598 = vunpack.c.l.b16 %v583
        %v599 = vunpack.c.l.b16 %v584
        %v600 = vunpack.c.l.b16 %v585
        %v601 = vunpack.c.l.b16 %v586
        %v602 = vpack.c.b16 %v599, %v598
        %v603 = vpack.c.b16 %v601, %v600
        %vm606 = vcmask 261120
        %v608 = vsel %vm606, %v582, 0
        %610 = vmatprep.subr.bf16.mxu0 0
        %611 = vmatpush1.bf16.msra.mxu0 %v602
        %612 = vmatprep.subr.bf16.mxu0 0
        %613 = vmatpush1.bf16.msra.mxu0 %v603
        %614 = vmatprep.subr.bf16.mxu0 0
        %615 = vmatpush1.bf16.msra.mxu0 0
        %616 = vmatprep.subr.bf16.mxu0 0
        %617 = vmatpush1.bf16.msra.mxu0 0
        %618 = vmatprep.subr.bf16.mxu0 0
        %619 = vmatpush1.bf16.msra.mxu0 0
        %620 = vmatprep.subr.bf16.mxu0 0
        %621 = vmatpush1.bf16.msra.mxu0 0
        %622 = vmatprep.subr.bf16.mxu0 0
        %623 = vmatpush1.bf16.msra.mxu0 0
        %624 = vmatprep.subr.bf16.mxu0 0
        %625 = vmatpush1.bf16.msra.mxu0 0
        %626 = vmatprep.subr.bf16.mxu0 0
        %627 = vmatpush1.bf16.msra.mxu0 0
        %628 = vmatprep.subr.bf16.mxu0 0
        %629 = vmatpush1.bf16.msra.mxu0 0
        %630 = vmatprep.subr.bf16.mxu0 0
        %631 = vmatpush1.bf16.msra.mxu0 0
        %632 = vmatprep.subr.bf16.mxu0 0
        %633 = vmatpush1.bf16.msra.mxu0 0
        %634 = vmatprep.subr.bf16.mxu0 0
        %635 = vmatpush1.bf16.msra.mxu0 0
        %636 = vmatprep.subr.bf16.mxu0 0
        %637 = vmatpush1.bf16.msra.mxu0 0
        %638 = vmatprep.subr.bf16.mxu0 0
        %639 = vmatpush1.bf16.msra.mxu0 0
        %640 = vmatprep.subr.bf16.mxu0 0
        %641 = vmatpush1.bf16.msra.mxu0 0
        %642 = vmatprep.mubr.bf16.mxu0 0
        %643 = vmatmul.mubr.bf16.gmra.mrb[0].mxu0 %v608
        %v644 = vpop.f32.mrb[0].mxu0
        %v645 = vadd.f32 %v592, %v644
        %v646 = vpop.f32.mrb[0].mxu0
        %v647 = vpop.f32.mrb[0].mxu0
        %v648 = vpop.f32.mrb[0].mxu0
        %649 = vdwg.mxu0
        %v650 = vpack.c.bf16 %v579, %v579
        %v651 = vld [vmem:[#allocation3] sm:$0xf]
        %v652 = vld [vmem:[#allocation3 + $0x4] sm:$0xf]
        %v653 = vld [vmem:[#allocation3 + $0x8] sm:$0xf]
        %v654 = vld [vmem:[#allocation3 + $0xc] sm:$0xf]
        %v655 = vld [vmem:[%s5] sm:$0x1]
        %v657 = vlaneseq
        %v658 = vshrl.u32 %v657, 7
        %v659 = vsub.s32 0, %v658
        %v660 = vrot.slane %v655, %v659
        %v666 = vunpack.c.l.b16 %v651
        %v667 = vunpack.c.l.b16 %v652
        %v668 = vunpack.c.l.b16 %v653
        %v669 = vunpack.c.l.b16 %v654
        %v670 = vpack.c.b16 %v667, %v666
        %v671 = vpack.c.b16 %v669, %v668
        %v675 = vsel %vm606, %v650, 0
        %677 = vmatprep.subr.bf16.mxu0 0
        %678 = vmatpush1.bf16.msra.mxu0 %v670
        %679 = vmatprep.subr.bf16.mxu0 0
        %680 = vmatpush1.bf16.msra.mxu0 %v671
        %681 = vmatprep.subr.bf16.mxu0 0
        %682 = vmatpush1.bf16.msra.mxu0 0
        %683 = vmatprep.subr.bf16.mxu0 0
        %684 = vmatpush1.bf16.msra.mxu0 0
        %685 = vmatprep.subr.bf16.mxu0 0
        %686 = vmatpush1.bf16.msra.mxu0 0
        %687 = vmatprep.subr.bf16.mxu0 0
        %688 = vmatpush1.bf16.msra.mxu0 0
        %689 = vmatprep.subr.bf16.mxu0 0
        %690 = vmatpush1.bf16.msra.mxu0 0
        %691 = vmatprep.subr.bf16.mxu0 0
        %692 = vmatpush1.bf16.msra.mxu0 0
        %693 = vmatprep.subr.bf16.mxu0 0
        %694 = vmatpush1.bf16.msra.mxu0 0
        %695 = vmatprep.subr.bf16.mxu0 0
        %696 = vmatpush1.bf16.msra.mxu0 0
        %697 = vmatprep.subr.bf16.mxu0 0
        %698 = vmatpush1.bf16.msra.mxu0 0
        %699 = vmatprep.subr.bf16.mxu0 0
        %700 = vmatpush1.bf16.msra.mxu0 0
        %701 = vmatprep.subr.bf16.mxu0 0
        %702 = vmatpush1.bf16.msra.mxu0 0
        %703 = vmatprep.subr.bf16.mxu0 0
        %704 = vmatpush1.bf16.msra.mxu0 0
        %705 = vmatprep.subr.bf16.mxu0 0
        %706 = vmatpush1.bf16.msra.mxu0 0
        %707 = vmatprep.subr.bf16.mxu0 0
        %708 = vmatpush1.bf16.msra.mxu0 0
        %709 = vmatprep.mubr.bf16.mxu0 0
        %710 = vmatmul.mubr.bf16.gmra.mrb[0].mxu0 %v675
        %v711 = vpop.f32.mrb[0].mxu0
        %v712 = vadd.f32 %v660, %v711
        %v713 = vpop.f32.mrb[0].mxu0
        %v714 = vpop.f32.mrb[0].mxu0
        %v715 = vpop.f32.mrb[0].mxu0
        %716 = vdwg.mxu0
        %v717 = vpack.c.bf16 %v645, %v645
        %v718 = vpack.c.bf16 %v712, %v712
        %720 = vrot.lane.b32.xlu0 %v717, 96
        %v721 = vpop.permute.xlu0 %720
        %vm722 = vcmask 64512
        %v724 = vsel %vm722, %v717, 0
        %v727 = vsel %vm722, %v721, 0
        %729 = vmatprep.subr.bf16.mxu0 0
        %730 = vmatpush1.bf16.xpose.msra.mxu0 %v727
        %731 = vmatprep.subr.bf16.mxu0 0
        %732 = vmatpush1.bf16.xpose.msra.mxu0 0
        %733 = vmatprep.subr.bf16.mxu0 0
        %734 = vmatpush1.bf16.xpose.msra.mxu0 0
        %735 = vmatprep.subr.bf16.mxu0 0
        %736 = vmatpush1.bf16.xpose.msra.mxu0 0
        %737 = vmatprep.subr.bf16.mxu0 0
        %738 = vmatpush1.bf16.xpose.msra.mxu0 0
        %739 = vmatprep.subr.bf16.mxu0 0
        %740 = vmatpush1.bf16.xpose.msra.mxu0 0
        %741 = vmatprep.subr.bf16.mxu0 0
        %742 = vmatpush1.bf16.xpose.msra.mxu0 0
        %743 = vmatprep.subr.bf16.mxu0 0
        %744 = vmatpush1.bf16.xpose.msra.mxu0 0
        %745 = vmatprep.subr.bf16.mxu0 0
        %746 = vmatpush1.bf16.xpose.msra.mxu0 0
        %747 = vmatprep.subr.bf16.mxu0 0
        %748 = vmatpush1.bf16.xpose.msra.mxu0 0
        %749 = vmatprep.subr.bf16.mxu0 0
        %750 = vmatpush1.bf16.xpose.msra.mxu0 0
        %751 = vmatprep.subr.bf16.mxu0 0
        %752 = vmatpush1.bf16.xpose.msra.mxu0 0
        %753 = vmatprep.subr.bf16.mxu0 0
        %754 = vmatpush1.bf16.xpose.msra.mxu0 0
        %755 = vmatprep.subr.bf16.mxu0 0
        %756 = vmatpush1.bf16.xpose.msra.mxu0 0
        %757 = vmatprep.subr.bf16.mxu0 0
        %758 = vmatpush1.bf16.xpose.msra.mxu0 0
        %759 = vmatprep.subr.bf16.mxu0 0
        %760 = vmatpush1.bf16.xpose.msra.mxu0 0
        %761 = vmatprep.mubr.bf16.mxu0 0
        %762 = vmatmul.mubr.bf16.gmra.mrb[0].mxu0 %v724
        %v763 = vpop.f32.mrb[0].mxu0
        %v764 = vadd.f32 0.0, %v763
        %v765 = vpop.f32.mrb[0].mxu0
        %v766 = vpop.f32.mrb[0].mxu0
        %v767 = vpop.f32.mrb[0].mxu0
        %768 = vdwg.mxu0
        %v769 = vsel %vm722, %v764, -inf
        %770 = vmax.xlane.f32.xlu0 %v769
        %v771 = vpop.xlane.xlu0 %770
        %v772 = vsub.f32 %v764, %v771
        %v773 = vmul.f32 %v772, 1.442695
        %v774 = vpow.pop %v773
        %v775 = vsel %vm722, %v774, 0.0
        %776 = vadd.xlane.f32.xlu0 %v775
        %v777 = vpop.xlane.xlu0 %776
        %v778 = vrcp.pop %v777
        %v779 = vmul.f32 %v774, %v778
        %v780 = vpack.c.bf16 %v779, %v779
        %v782 = vsel %vm722, %v780, 0
        %vm784 = vcmask 1043456
        %v786 = vsel %vm784, %v718, 0
        %788 = vmatprep.subr.bf16.mxu0 0
        %789 = vmatpush1.bf16.msra.mxu0 %v786
        %790 = vmatprep.subr.bf16.mxu0 0
        %791 = vmatpush1.bf16.msra.mxu0 0
        %792 = vmatprep.subr.bf16.mxu0 0
        %793 = vmatpush1.bf16.msra.mxu0 0
        %794 = vmatprep.subr.bf16.mxu0 0
        %795 = vmatpush1.bf16.msra.mxu0 0
        %796 = vmatprep.subr.bf16.mxu0 0
        %797 = vmatpush1.bf16.msra.mxu0 0
        %798 = vmatprep.subr.bf16.mxu0 0
        %799 = vmatpush1.bf16.msra.mxu0 0
        %800 = vmatprep.subr.bf16.mxu0 0
        %801 = vmatpush1.bf16.msra.mxu0 0
        %802 = vmatprep.subr.bf16.mxu0 0
        %803 = vmatpush1.bf16.msra.mxu0 0
        %804 = vmatprep.subr.bf16.mxu0 0
        %805 = vmatpush1.bf16.msra.mxu0 0
        %806 = vmatprep.subr.bf16.mxu0 0
        %807 = vmatpush1.bf16.msra.mxu0 0
        %808 = vmatprep.subr.bf16.mxu0 0
        %809 = vmatpush1.bf16.msra.mxu0 0
        %810 = vmatprep.subr.bf16.mxu0 0
        %811 = vmatpush1.bf16.msra.mxu0 0
        %812 = vmatprep.subr.bf16.mxu0 0
        %813 = vmatpush1.bf16.msra.mxu0 0
        %814 = vmatprep.subr.bf16.mxu0 0
        %815 = vmatpush1.bf16.msra.mxu0 0
        %816 = vmatprep.subr.bf16.mxu0 0
        %817 = vmatpush1.bf16.msra.mxu0 0
        %818 = vmatprep.subr.bf16.mxu0 0
        %819 = vmatpush1.bf16.msra.mxu0 0
        %820 = vmatprep.mubr.bf16.mxu0 0
        %821 = vmatmul.mubr.bf16.gmra.mrb[0].mxu0 %v782
        %v822 = vpop.f32.mrb[0].mxu0
        %v823 = vadd.f32 0.0, %v822
        %v824 = vpop.f32.mrb[0].mxu0
        %v825 = vpop.f32.mrb[0].mxu0
        %v826 = vpop.f32.mrb[0].mxu0
        %827 = vdwg.mxu0
        %v828 = vpack.c.bf16 %v823, %v823
        %vm829 = vcmask 60416
        %830 = vst.msk [vmem:[#allocation2] sm:$0xf] %vm829, %v828
        %831 = vrot.lane.b32.xlu0 %v717, 120
        %v832 = vpop.permute.xlu0 %831
        %833 = vrot.lane.b32.xlu0 %v717, 88
        %v834 = vpop.permute.xlu0 %833
        %v836 = vsel %vm722, %v832, 0
        %v839 = vsel %vm722, %v834, 0
        %841 = vmatprep.subr.bf16.mxu0 0
        %842 = vmatpush1.bf16.xpose.msra.mxu0 %v839
        %843 = vmatprep.subr.bf16.mxu0 0
        %844 = vmatpush1.bf16.xpose.msra.mxu0 0
        %845 = vmatprep.subr.bf16.mxu0 0
        %846 = vmatpush1.bf16.xpose.msra.mxu0 0
        %847 = vmatprep.subr.bf16.mxu0 0
        %848 = vmatpush1.bf16.xpose.msra.mxu0 0
        %849 = vmatprep.subr.bf16.mxu0 0
        %850 = vmatpush1.bf16.xpose.msra.mxu0 0
        %851 = vmatprep.subr.bf16.mxu0 0
        %852 = vmatpush1.bf16.xpose.msra.mxu0 0
        %853 = vmatprep.subr.bf16.mxu0 0
        %854 = vmatpush1.bf16.xpose.msra.mxu0 0
        %855 = vmatprep.subr.bf16.mxu0 0
        %856 = vmatpush1.bf16.xpose.msra.mxu0 0
        %857 = vmatprep.subr.bf16.mxu0 0
        %858 = vmatpush1.bf16.xpose.msra.mxu0 0
        %859 = vmatprep.subr.bf16.mxu0 0
        %860 = vmatpush1.bf16.xpose.msra.mxu0 0
        %861 = vmatprep.subr.bf16.mxu0 0
        %862 = vmatpush1.bf16.xpose.msra.mxu0 0
        %863 = vmatprep.subr.bf16.mxu0 0
        %864 = vmatpush1.bf16.xpose.msra.mxu0 0
        %865 = vmatprep.subr.bf16.mxu0 0
        %866 = vmatpush1.bf16.xpose.msra.mxu0 0
        %867 = vmatprep.subr.bf16.mxu0 0
        %868 = vmatpush1.bf16.xpose.msra.mxu0 0
        %869 = vmatprep.subr.bf16.mxu0 0
        %870 = vmatpush1.bf16.xpose.msra.mxu0 0
        %871 = vmatprep.subr.bf16.mxu0 0
        %872 = vmatpush1.bf16.xpose.msra.mxu0 0
        %873 = vmatprep.mubr.bf16.mxu0 0
        %874 = vmatmul.mubr.bf16.gmra.mrb[0].mxu0 %v836
        %v875 = vpop.f32.mrb[0].mxu0
        %v876 = vadd.f32 0.0, %v875
        %v877 = vpop.f32.mrb[0].mxu0
        %v878 = vpop.f32.mrb[0].mxu0
        %v879 = vpop.f32.mrb[0].mxu0
        %880 = vdwg.mxu0
        %v881 = vsel %vm722, %v876, -inf
        %882 = vmax.xlane.f32.xlu0 %v881
        %v883 = vpop.xlane.xlu0 %882
        %v884 = vsub.f32 %v876, %v883
        %v885 = vmul.f32 %v884, 1.442695
        %v886 = vpow.pop %v885
        %v887 = vsel %vm722, %v886, 0.0
        %888 = vadd.xlane.f32.xlu0 %v887
        %v889 = vpop.xlane.xlu0 %888
        %v890 = vrcp.pop %v889
        %v891 = vmul.f32 %v886, %v890
        %v892 = vpack.c.bf16 %v891, %v891
        %894 = vrot.lane.b32.xlu0 %v718, 120
        %v895 = vpop.permute.xlu0 %894
        %v897 = vsel %vm722, %v892, 0
        %v900 = vsel %vm784, %v895, 0
        %902 = vmatprep.subr.bf16.mxu0 0
        %903 = vmatpush1.bf16.msra.mxu0 %v900
        %904 = vmatprep.subr.bf16.mxu0 0
        %905 = vmatpush1.bf16.msra.mxu0 0
        %906 = vmatprep.subr.bf16.mxu0 0
        %907 = vmatpush1.bf16.msra.mxu0 0
        %908 = vmatprep.subr.bf16.mxu0 0
        %909 = vmatpush1.bf16.msra.mxu0 0
        %910 = vmatprep.subr.bf16.mxu0 0
        %911 = vmatpush1.bf16.msra.mxu0 0
        %912 = vmatprep.subr.bf16.mxu0 0
        %913 = vmatpush1.bf16.msra.mxu0 0
        %914 = vmatprep.subr.bf16.mxu0 0
        %915 = vmatpush1.bf16.msra.mxu0 0
        %916 = vmatprep.subr.bf16.mxu0 0
        %917 = vmatpush1.bf16.msra.mxu0 0
        %918 = vmatprep.subr.bf16.mxu0 0
        %919 = vmatpush1.bf16.msra.mxu0 0
        %920 = vmatprep.subr.bf16.mxu0 0
        %921 = vmatpush1.bf16.msra.mxu0 0
        %922 = vmatprep.subr.bf16.mxu0 0
        %923 = vmatpush1.bf16.msra.mxu0 0
        %924 = vmatprep.subr.bf16.mxu0 0
        %925 = vmatpush1.bf16.msra.mxu0 0
        %926 = vmatprep.subr.bf16.mxu0 0
        %927 = vmatpush1.bf16.msra.mxu0 0
        %928 = vmatprep.subr.bf16.mxu0 0
        %929 = vmatpush1.bf16.msra.mxu0 0
        %930 = vmatprep.subr.bf16.mxu0 0
        %931 = vmatpush1.bf16.msra.mxu0 0
        %932 = vmatprep.subr.bf16.mxu0 0
        %933 = vmatpush1.bf16.msra.mxu0 0
        %934 = vmatprep.mubr.bf16.mxu0 0
        %935 = vmatmul.mubr.bf16.gmra.mrb[0].mxu0 %v897
        %v936 = vpop.f32.mrb[0].mxu0
        %v937 = vadd.f32 0.0, %v936
        %v938 = vpop.f32.mrb[0].mxu0
        %v939 = vpop.f32.mrb[0].mxu0
        %v940 = vpop.f32.mrb[0].mxu0
        %941 = vdwg.mxu0
        %v942 = vpack.c.bf16 %v937, %v937
        %v944 = vunpack.c.l.b16 %v942
        %v945 = vpack.c.b16 %v944, %v944
        %946 = vrot.lane.b32.xlu0 %v945, 8
        %v947 = vpop.permute.xlu0 %946
        %vm949 = vcmask 126016
        %950 = vst.msk [vmem:[#allocation2] sm:$0xf] %vm949, %v947
        %951 = vrot.lane.b32.xlu0 %v717, 112
        %v952 = vpop.permute.xlu0 %951
        %953 = vrot.lane.b32.xlu0 %v717, 80
        %v954 = vpop.permute.xlu0 %953
        %v956 = vsel %vm722, %v952, 0
        %v959 = vsel %vm722, %v954, 0
        %961 = vmatprep.subr.bf16.mxu0 0
        %962 = vmatpush1.bf16.xpose.msra.mxu0 %v959
        %963 = vmatprep.subr.bf16.mxu0 0
        %964 = vmatpush1.bf16.xpose.msra.mxu0 0
        %965 = vmatprep.subr.bf16.mxu0 0
        %966 = vmatpush1.bf16.xpose.msra.mxu0 0
        %967 = vmatprep.subr.bf16.mxu0 0
        %968 = vmatpush1.bf16.xpose.msra.mxu0 0
        %969 = vmatprep.subr.bf16.mxu0 0
        %970 = vmatpush1.bf16.xpose.msra.mxu0 0
        %971 = vmatprep.subr.bf16.mxu0 0
        %972 = vmatpush1.bf16.xpose.msra.mxu0 0
        %973 = vmatprep.subr.bf16.mxu0 0
        %974 = vmatpush1.bf16.xpose.msra.mxu0 0
        %975 = vmatprep.subr.bf16.mxu0 0
        %976 = vmatpush1.bf16.xpose.msra.mxu0 0
        %977 = vmatprep.subr.bf16.mxu0 0
        %978 = vmatpush1.bf16.xpose.msra.mxu0 0
        %979 = vmatprep.subr.bf16.mxu0 0
        %980 = vmatpush1.bf16.xpose.msra.mxu0 0
        %981 = vmatprep.subr.bf16.mxu0 0
        %982 = vmatpush1.bf16.xpose.msra.mxu0 0
        %983 = vmatprep.subr.bf16.mxu0 0
        %984 = vmatpush1.bf16.xpose.msra.mxu0 0
        %985 = vmatprep.subr.bf16.mxu0 0
        %986 = vmatpush1.bf16.xpose.msra.mxu0 0
        %987 = vmatprep.subr.bf16.mxu0 0
        %988 = vmatpush1.bf16.xpose.msra.mxu0 0
        %989 = vmatprep.subr.bf16.mxu0 0
        %990 = vmatpush1.bf16.xpose.msra.mxu0 0
        %991 = vmatprep.subr.bf16.mxu0 0
        %992 = vmatpush1.bf16.xpose.msra.mxu0 0
        %993 = vmatprep.mubr.bf16.mxu0 0
        %994 = vmatmul.mubr.bf16.gmra.mrb[0].mxu0 %v956
        %v995 = vpop.f32.mrb[0].mxu0
        %v996 = vadd.f32 0.0, %v995
        %v997 = vpop.f32.mrb[0].mxu0
        %v998 = vpop.f32.mrb[0].mxu0
        %v999 = vpop.f32.mrb[0].mxu0
        %1000 = vdwg.mxu0
        %v1001 = vsel %vm722, %v996, -inf
        %1002 = vmax.xlane.f32.xlu0 %v1001
        %v1003 = vpop.xlane.xlu0 %1002
        %v1004 = vsub.f32 %v996, %v1003
        %v1005 = vmul.f32 %v1004, 1.442695
        %v1006 = vpow.pop %v1005
        %v1007 = vsel %vm722, %v1006, 0.0
        %1008 = vadd.xlane.f32.xlu0 %v1007
        %v1009 = vpop.xlane.xlu0 %1008
        %v1010 = vrcp.pop %v1009
        %v1011 = vmul.f32 %v1006, %v1010
        %v1012 = vpack.c.bf16 %v1011, %v1011
        %1013 = vrot.lane.b32.xlu0 %v718, 112
        %v1014 = vpop.permute.xlu0 %1013
        %v1016 = vsel %vm722, %v1012, 0
        %v1019 = vsel %vm784, %v1014, 0
        %1021 = vmatprep.subr.bf16.mxu0 0
        %1022 = vmatpush1.bf16.msra.mxu0 %v1019
        %1023 = vmatprep.subr.bf16.mxu0 0
        %1024 = vmatpush1.bf16.msra.mxu0 0
        %1025 = vmatprep.subr.bf16.mxu0 0
        %1026 = vmatpush1.bf16.msra.mxu0 0
        %1027 = vmatprep.subr.bf16.mxu0 0
        %1028 = vmatpush1.bf16.msra.mxu0 0
        %1029 = vmatprep.subr.bf16.mxu0 0
        %1030 = vmatpush1.bf16.msra.mxu0 0
        %1031 = vmatprep.subr.bf16.mxu0 0
        %1032 = vmatpush1.bf16.msra.mxu0 0
        %1033 = vmatprep.subr.bf16.mxu0 0
        %1034 = vmatpush1.bf16.msra.mxu0 0
        %1035 = vmatprep.subr.bf16.mxu0 0
        %1036 = vmatpush1.bf16.msra.mxu0 0
        %1037 = vmatprep.subr.bf16.mxu0 0
        %1038 = vmatpush1.bf16.msra.mxu0 0
        %1039 = vmatprep.subr.bf16.mxu0 0
        %1040 = vmatpush1.bf16.msra.mxu0 0
        %1041 = vmatprep.subr.bf16.mxu0 0
        %1042 = vmatpush1.bf16.msra.mxu0 0
        %1043 = vmatprep.subr.bf16.mxu0 0
        %1044 = vmatpush1.bf16.msra.mxu0 0
        %1045 = vmatprep.subr.bf16.mxu0 0
        %1046 = vmatpush1.bf16.msra.mxu0 0
        %1047 = vmatprep.subr.bf16.mxu0 0
        %1048 = vmatpush1.bf16.msra.mxu0 0
        %1049 = vmatprep.subr.bf16.mxu0 0
        %1050 = vmatpush1.bf16.msra.mxu0 0
        %1051 = vmatprep.subr.bf16.mxu0 0
        %1052 = vmatpush1.bf16.msra.mxu0 0
        %1053 = vmatprep.mubr.bf16.mxu0 0
        %1054 = vmatmul.mubr.bf16.gmra.mrb[0].mxu0 %v1016
        %v1055 = vpop.f32.mrb[0].mxu0
        %v1056 = vadd.f32 0.0, %v1055
        %v1057 = vpop.f32.mrb[0].mxu0
        %v1058 = vpop.f32.mrb[0].mxu0
        %v1059 = vpop.f32.mrb[0].mxu0
        %1060 = vdwg.mxu0
        %v1061 = vpack.c.bf16 %v1056, %v1056
        %v1063 = vunpack.c.l.b16 %v1061
        %v1064 = vpack.c.b16 %v1063, %v1063
        %1065 = vrot.lane.b32.xlu0 %v1064, 16
        %v1066 = vpop.permute.xlu0 %1065
        %vm1068 = vcmask 191616
        %1069 = vst.msk [vmem:[#allocation2] sm:$0xf] %vm1068, %v1066
        %1070 = vrot.lane.b32.xlu0 %v717, 104
        %v1071 = vpop.permute.xlu0 %1070
        %1072 = vrot.lane.b32.xlu0 %v717, 72
        %v1073 = vpop.permute.xlu0 %1072
        %v1075 = vsel %vm722, %v1071, 0
        %v1078 = vsel %vm722, %v1073, 0
        %1080 = vmatprep.subr.bf16.mxu0 0
        %1081 = vmatpush1.bf16.xpose.msra.mxu0 %v1078
        %1082 = vmatprep.subr.bf16.mxu0 0
        %1083 = vmatpush1.bf16.xpose.msra.mxu0 0
        %1084 = vmatprep.subr.bf16.mxu0 0
        %1085 = vmatpush1.bf16.xpose.msra.mxu0 0
        %1086 = vmatprep.subr.bf16.mxu0 0
        %1087 = vmatpush1.bf16.xpose.msra.mxu0 0
        %1088 = vmatprep.subr.bf16.mxu0 0
        %1089 = vmatpush1.bf16.xpose.msra.mxu0 0
        %1090 = vmatprep.subr.bf16.mxu0 0
        %1091 = vmatpush1.bf16.xpose.msra.mxu0 0
        %1092 = vmatprep.subr.bf16.mxu0 0
        %1093 = vmatpush1.bf16.xpose.msra.mxu0 0
        %1094 = vmatprep.subr.bf16.mxu0 0
        %1095 = vmatpush1.bf16.xpose.msra.mxu0 0
        %1096 = vmatprep.subr.bf16.mxu0 0
        %1097 = vmatpush1.bf16.xpose.msra.mxu0 0
        %1098 = vmatprep.subr.bf16.mxu0 0
        %1099 = vmatpush1.bf16.xpose.msra.mxu0 0
        %1100 = vmatprep.subr.bf16.mxu0 0
        %1101 = vmatpush1.bf16.xpose.msra.mxu0 0
        %1102 = vmatprep.subr.bf16.mxu0 0
        %1103 = vmatpush1.bf16.xpose.msra.mxu0 0
        %1104 = vmatprep.subr.bf16.mxu0 0
        %1105 = vmatpush1.bf16.xpose.msra.mxu0 0
        %1106 = vmatprep.subr.bf16.mxu0 0
        %1107 = vmatpush1.bf16.xpose.msra.mxu0 0
        %1108 = vmatprep.subr.bf16.mxu0 0
        %1109 = vmatpush1.bf16.xpose.msra.mxu0 0
        %1110 = vmatprep.subr.bf16.mxu0 0
        %1111 = vmatpush1.bf16.xpose.msra.mxu0 0
        %1112 = vmatprep.mubr.bf16.mxu0 0
        %1113 = vmatmul.mubr.bf16.gmra.mrb[0].mxu0 %v1075
        %v1114 = vpop.f32.mrb[0].mxu0
        %v1115 = vadd.f32 0.0, %v1114
        %v1116 = vpop.f32.mrb[0].mxu0
        %v1117 = vpop.f32.mrb[0].mxu0
        %v1118 = vpop.f32.mrb[0].mxu0
        %1119 = vdwg.mxu0
        %v1120 = vsel %vm722, %v1115, -inf
        %1121 = vmax.xlane.f32.xlu0 %v1120
        %v1122 = vpop.xlane.xlu0 %1121
        %v1123 = vsub.f32 %v1115, %v1122
        %v1124 = vmul.f32 %v1123, 1.442695
        %v1125 = vpow.pop %v1124
        %v1126 = vsel %vm722, %v1125, 0.0
        %1127 = vadd.xlane.f32.xlu0 %v1126
        %v1128 = vpop.xlane.xlu0 %1127
        %v1129 = vrcp.pop %v1128
        %v1130 = vmul.f32 %v1125, %v1129
        %v1131 = vpack.c.bf16 %v1130, %v1130
        %1132 = vrot.lane.b32.xlu0 %v718, 104
        %v1133 = vpop.permute.xlu0 %1132
        %v1135 = vsel %vm722, %v1131, 0
        %v1138 = vsel %vm784, %v1133, 0
        %1140 = vmatprep.subr.bf16.mxu0 0
        %1141 = vmatpush1.bf16.msra.mxu0 %v1138
        %1142 = vmatprep.subr.bf16.mxu0 0
        %1143 = vmatpush1.bf16.msra.mxu0 0
        %1144 = vmatprep.subr.bf16.mxu0 0
        %1145 = vmatpush1.bf16.msra.mxu0 0
        %1146 = vmatprep.subr.bf16.mxu0 0
        %1147 = vmatpush1.bf16.msra.mxu0 0
        %1148 = vmatprep.subr.bf16.mxu0 0
        %1149 = vmatpush1.bf16.msra.mxu0 0
        %1150 = vmatprep.subr.bf16.mxu0 0
        %1151 = vmatpush1.bf16.msra.mxu0 0
        %1152 = vmatprep.subr.bf16.mxu0 0
        %1153 = vmatpush1.bf16.msra.mxu0 0
        %1154 = vmatprep.subr.bf16.mxu0 0
        %1155 = vmatpush1.bf16.msra.mxu0 0
        %1156 = vmatprep.subr.bf16.mxu0 0
        %1157 = vmatpush1.bf16.msra.mxu0 0
        %1158 = vmatprep.subr.bf16.mxu0 0
        %1159 = vmatpush1.bf16.msra.mxu0 0
        %1160 = vmatprep.subr.bf16.mxu0 0
        %1161 = vmatpush1.bf16.msra.mxu0 0
        %1162 = vmatprep.subr.bf16.mxu0 0
        %1163 = vmatpush1.bf16.msra.mxu0 0
        %1164 = vmatprep.subr.bf16.mxu0 0
        %1165 = vmatpush1.bf16.msra.mxu0 0
        %1166 = vmatprep.subr.bf16.mxu0 0
        %1167 = vmatpush1.bf16.msra.mxu0 0
        %1168 = vmatprep.subr.bf16.mxu0 0
        %1169 = vmatpush1.bf16.msra.mxu0 0
        %1170 = vmatprep.subr.bf16.mxu0 0
        %1171 = vmatpush1.bf16.msra.mxu0 0
        %1172 = vmatprep.mubr.bf16.mxu0 0
        %1173 = vmatmul.mubr.bf16.gmra.mrb[0].mxu0 %v1135
        %v1174 = vpop.f32.mrb[0].mxu0
        %v1175 = vadd.f32 0.0, %v1174
        %v1176 = vpop.f32.mrb[0].mxu0
        %v1177 = vpop.f32.mrb[0].mxu0
        %v1178 = vpop.f32.mrb[0].mxu0
        %1179 = vdwg.mxu0
        %v1180 = vpack.c.bf16 %v1175, %v1175
        %v1182 = vunpack.c.l.b16 %v1180
        %v1183 = vpack.c.b16 %v1182, %v1182
        %1184 = vrot.lane.b32.xlu0 %v1183, 24
        %v1185 = vpop.permute.xlu0 %1184
        %vm1187 = vcmask 257216
        %1188 = vst.msk [vmem:[#allocation2] sm:$0xf] %vm1187, %v1185
        %v1189 = vld [vmem:[#allocation2] sm:$0xf]
        %v1190 = vld [vmem:[#allocation6] sm:$0xf]
        %v1191 = vld [vmem:[#allocation6 + $0x4] sm:$0xf]
        %v1192 = vld [vmem:[#allocation6 + $0x8] sm:$0xf]
        %v1193 = vld [vmem:[#allocation6 + $0xc] sm:$0xf]
        %v1194 = vld [vmem:[%s7] sm:$0x1]
        %v1196 = vlaneseq
        %v1197 = vshrl.u32 %v1196, 7
        %v1198 = vsub.s32 0, %v1197
        %v1199 = vrot.slane %v1194, %v1198
        %v1205 = vunpack.c.l.b16 %v1190
        %v1206 = vunpack.c.l.b16 %v1191
        %v1207 = vunpack.c.l.b16 %v1192
        %v1208 = vunpack.c.l.b16 %v1193
        %v1209 = vpack.c.b16 %v1206, %v1205
        %v1210 = vpack.c.b16 %v1208, %v1207
        %v1214 = vsel %vm606, %v1189, 0
        %1216 = vmatprep.subr.bf16.mxu0 0
        %1217 = vmatpush1.bf16.msra.mxu0 %v1209
        %1218 = vmatprep.subr.bf16.mxu0 0
        %1219 = vmatpush1.bf16.msra.mxu0 %v1210
        %1220 = vmatprep.subr.bf16.mxu0 0
        %1221 = vmatpush1.bf16.msra.mxu0 0
        %1222 = vmatprep.subr.bf16.mxu0 0
        %1223 = vmatpush1.bf16.msra.mxu0 0
        %1224 = vmatprep.subr.bf16.mxu0 0
        %1225 = vmatpush1.bf16.msra.mxu0 0
        %1226 = vmatprep.subr.bf16.mxu0 0
        %1227 = vmatpush1.bf16.msra.mxu0 0
        %1228 = vmatprep.subr.bf16.mxu0 0
        %1229 = vmatpush1.bf16.msra.mxu0 0
        %1230 = vmatprep.subr.bf16.mxu0 0
        %1231 = vmatpush1.bf16.msra.mxu0 0
        %1232 = vmatprep.subr.bf16.mxu0 0
        %1233 = vmatpush1.bf16.msra.mxu0 0
        %1234 = vmatprep.subr.bf16.mxu0 0
        %1235 = vmatpush1.bf16.msra.mxu0 0
        %1236 = vmatprep.subr.bf16.mxu0 0
        %1237 = vmatpush1.bf16.msra.mxu0 0
        %1238 = vmatprep.subr.bf16.mxu0 0
        %1239 = vmatpush1.bf16.msra.mxu0 0
        %1240 = vmatprep.subr.bf16.mxu0 0
        %1241 = vmatpush1.bf16.msra.mxu0 0
        %1242 = vmatprep.subr.bf16.mxu0 0
        %1243 = vmatpush1.bf16.msra.mxu0 0
        %1244 = vmatprep.subr.bf16.mxu0 0
        %1245 = vmatpush1.bf16.msra.mxu0 0
        %1246 = vmatprep.subr.bf16.mxu0 0
        %1247 = vmatpush1.bf16.msra.mxu0 0
        %1248 = vmatprep.mubr.bf16.mxu0 0
        %1249 = vmatmul.mubr.bf16.gmra.mrb[0].mxu0 %v1214
        %v1250 = vpop.f32.mrb[0].mxu0
        %v1251 = vadd.f32 %v1199, %v1250
        %v1252 = vpop.f32.mrb[0].mxu0
        %v1253 = vpop.f32.mrb[0].mxu0
        %v1254 = vpop.f32.mrb[0].mxu0
        %1255 = vdwg.mxu0
        %v1256 = vadd.f32 %v579, %v1251
        %v1257 = vsel %vm606, %v1256, 0.0
        %1258 = vadd.xlane.f32.xlu0 %v1257
        %v1259 = vpop.xlane.xlu0 %1258
        %v1260 = vrcp.pop 32.0
        %v1261 = vmul.f32 %v1259, %v1260
        %v1262 = vsub.f32 %v1256, %v1261
        %v1263 = vmul.f32 %v1262, %v1262
        %v1264 = vsel %vm606, %v1263, 0.0
        %1265 = vadd.xlane.f32.xlu0 %v1264
        %v1266 = vpop.xlane.xlu0 %1265
        %v1267 = vmul.f32 %v1266, %v1260
        %v1268 = vadd.f32 %v1267, 1e-05
        %v1269 = vrsqrt.pop %v1268
        %v1270 = vmul.f32 %v1262, %v1269
        %v1271 = vld [vmem:[%s12] sm:$0x1]
        %v1273 = vlaneseq
        %v1274 = vshrl.u32 %v1273, 7
        %v1275 = vsub.s32 0, %v1274
        %v1276 = vrot.slane %v1271, %v1275
        %v1278 = vmul.f32 %v1270, %v1276
        %v1279 = vld [vmem:[%s13] sm:$0x1]
        %v1281 = vlaneseq
        %v1282 = vshrl.u32 %v1281, 7
        %v1283 = vsub.s32 0, %v1282
        %v1284 = vrot.slane %v1279, %v1283
        %v1286 = vadd.f32 %v1278, %v1284
        %v1287 = vpack.c.bf16 %v1286, %v1286
        %v1288 = vld [vmem:[#allocation8] sm:$0xf]
        %v1289 = vld [vmem:[#allocation8 + $0x4] sm:$0xf]
        %v1290 = vld [vmem:[#allocation8 + $0x8] sm:$0xf]
        %v1291 = vld [vmem:[#allocation8 + $0xc] sm:$0xf]
        %v1292 = vld [vmem:[%s9] sm:$0x1]
        %v1294 = vlaneseq
        %v1295 = vshrl.u32 %v1294, 7
        %v1296 = vsub.s32 0, %v1295
        %v1297 = vrot.slane %v1292, %v1296
        %v1303 = vunpack.c.l.b16 %v1288
        %v1304 = vunpack.c.l.b16 %v1289
        %v1305 = vunpack.c.l.b16 %v1290
        %v1306 = vunpack.c.l.b16 %v1291
        %v1307 = vpack.c.b16 %v1304, %v1303
        %v1308 = vpack.c.b16 %v1306, %v1305
        %v1312 = vsel %vm606, %v1287, 0
        %1314 = vmatprep.subr.bf16.mxu0 0
        %1315 = vmatpush1.bf16.msra.mxu0 %v1307
        %1316 = vmatprep.subr.bf16.mxu0 0
        %1317 = vmatpush1.bf16.msra.mxu0 %v1308
        %1318 = vmatprep.subr.bf16.mxu0 0
        %1319 = vmatpush1.bf16.msra.mxu0 0
        %1320 = vmatprep.subr.bf16.mxu0 0
        %1321 = vmatpush1.bf16.msra.mxu0 0
        %1322 = vmatprep.subr.bf16.mxu0 0
        %1323 = vmatpush1.bf16.msra.mxu0 0
        %1324 = vmatprep.subr.bf16.mxu0 0
        %1325 = vmatpush1.bf16.msra.mxu0 0
        %1326 = vmatprep.subr.bf16.mxu0 0
        %1327 = vmatpush1.bf16.msra.mxu0 0
        %1328 = vmatprep.subr.bf16.mxu0 0
        %1329 = vmatpush1.bf16.msra.mxu0 0
        %1330 = vmatprep.subr.bf16.mxu0 0
        %1331 = vmatpush1.bf16.msra.mxu0 0
        %1332 = vmatprep.subr.bf16.mxu0 0
        %1333 = vmatpush1.bf16.msra.mxu0 0
        %1334 = vmatprep.subr.bf16.mxu0 0
        %1335 = vmatpush1.bf16.msra.mxu0 0
        %1336 = vmatprep.subr.bf16.mxu0 0
        %1337 = vmatpush1.bf16.msra.mxu0 0
        %1338 = vmatprep.subr.bf16.mxu0 0
        %1339 = vmatpush1.bf16.msra.mxu0 0
        %1340 = vmatprep.subr.bf16.mxu0 0
        %1341 = vmatpush1.bf16.msra.mxu0 0
        %1342 = vmatprep.subr.bf16.mxu0 0
        %1343 = vmatpush1.bf16.msra.mxu0 0
        %1344 = vmatprep.subr.bf16.mxu0 0
        %1345 = vmatpush1.bf16.msra.mxu0 0
        %1346 = vmatprep.mubr.bf16.mxu0 0
        %1347 = vmatmul.mubr.bf16.gmra.mrb[0].mxu0 %v1312
        %v1348 = vpop.f32.mrb[0].mxu0
        %v1349 = vadd.f32 %v1297, %v1348
        %v1350 = vpop.f32.mrb[0].mxu0
        %v1351 = vpop.f32.mrb[0].mxu0
        %v1352 = vpop.f32.mrb[0].mxu0
        %1353 = vdwg.mxu0
        %v1354 = vmax.f32 %v1349, 0.0
        %v1355 = vpack.c.bf16 %v1354, %v1354
        %v1356 = vld [vmem:[%s10] sm:$0xf]
        %v1357 = vld [vmem:[%s10 + $0x4] sm:$0xf]
        %v1358 = vld [vmem:[%s10 + $0x8] sm:$0xf]
        %v1359 = vld [vmem:[%s10 + $0xc] sm:$0xf]
        %v1360 = vld [vmem:[%s10 + $0x10] sm:$0xf]
        %v1361 = vld [vmem:[%s10 + $0x14] sm:$0xf]
        %v1362 = vld [vmem:[%s10 + $0x18] sm:$0xf]
        %v1363 = vld [vmem:[%s10 + $0x1c] sm:$0xf]
        %v1364 = vld [vmem:[%s11] sm:$0x1]
        %v1366 = vlaneseq
        %v1367 = vshrl.u32 %v1366, 7
        %v1368 = vsub.s32 0, %v1367
        %v1369 = vrot.slane %v1364, %v1368
        %v1379 = vunpack.c.l.b16 %v1356
        %v1380 = vunpack.c.l.b16 %v1357
        %v1381 = vunpack.c.l.b16 %v1358
        %v1382 = vunpack.c.l.b16 %v1359
        %v1383 = vunpack.c.l.b16 %v1360
        %v1384 = vunpack.c.l.b16 %v1361
        %v1385 = vunpack.c.l.b16 %v1362
        %v1386 = vunpack.c.l.b16 %v1363
        %v1387 = vpack.c.b16 %v1380, %v1379
        %v1388 = vpack.c.b16 %v1382, %v1381
        %v1389 = vpack.c.b16 %v1384, %v1383
        %v1390 = vpack.c.b16 %v1386, %v1385
        %vm1395 = vcmask 523264
        %v1397 = vsel %vm1395, %v1355, 0
        %1399 = vmatprep.subr.bf16.mxu0 0
        %1400 = vmatpush1.bf16.msra.mxu0 %v1387
        %1401 = vmatprep.subr.bf16.mxu0 0
        %1402 = vmatpush1.bf16.msra.mxu0 %v1388
        %1403 = vmatprep.subr.bf16.mxu0 0
        %1404 = vmatpush1.bf16.msra.mxu0 %v1389
        %1405 = vmatprep.subr.bf16.mxu0 0
        %1406 = vmatpush1.bf16.msra.mxu0 %v1390
        %1407 = vmatprep.subr.bf16.mxu0 0
        %1408 = vmatpush1.bf16.msra.mxu0 0
        %1409 = vmatprep.subr.bf16.mxu0 0
        %1410 = vmatpush1.bf16.msra.mxu0 0
        %1411 = vmatprep.subr.bf16.mxu0 0
        %1412 = vmatpush1.bf16.msra.mxu0 0
        %1413 = vmatprep.subr.bf16.mxu0 0
        %1414 = vmatpush1.bf16.msra.mxu0 0
        %1415 = vmatprep.subr.bf16.mxu0 0
        %1416 = vmatpush1.bf16.msra.mxu0 0
        %1417 = vmatprep.subr.bf16.mxu0 0
        %1418 = vmatpush1.bf16.msra.mxu0 0
        %1419 = vmatprep.subr.bf16.mxu0 0
        %1420 = vmatpush1.bf16.msra.mxu0 0
        %1421 = vmatprep.subr.bf16.mxu0 0
        %1422 = vmatpush1.bf16.msra.mxu0 0
        %1423 = vmatprep.subr.bf16.mxu0 0
        %1424 = vmatpush1.bf16.msra.mxu0 0
        %1425 = vmatprep.subr.bf16.mxu0 0
        %1426 = vmatpush1.bf16.msra.mxu0 0
        %1427 = vmatprep.subr.bf16.mxu0 0
        %1428 = vmatpush1.bf16.msra.mxu0 0
        %1429 = vmatprep.subr.bf16.mxu0 0
        %1430 = vmatpush1.bf16.msra.mxu0 0
        %1431 = vmatprep.mubr.bf16.mxu0 0
        %1432 = vmatmul.mubr.bf16.gmra.mrb[0].mxu0 %v1397
        %v1433 = vpop.f32.mrb[0].mxu0
        %v1434 = vadd.f32 %v1369, %v1433
        %v1435 = vpop.f32.mrb[0].mxu0
        %v1436 = vpop.f32.mrb[0].mxu0
        %v1437 = vpop.f32.mrb[0].mxu0
        %1438 = vdwg.mxu0
        %v1439 = vadd.f32 %v1286, %v1434
        %v1440 = vsel %vm606, %v1439, 0.0
        %1441 = vadd.xlane.f32.xlu0 %v1440
        %v1442 = vpop.xlane.xlu0 %1441
        %v1443 = vmul.f32 %v1442, %v1260
        %v1444 = vsub.f32 %v1439, %v1443
        %v1445 = vmul.f32 %v1444, %v1444
        %v1446 = vsel %vm606, %v1445, 0.0
        %1447 = vadd.xlane.f32.xlu0 %v1446
        %v1448 = vpop.xlane.xlu0 %1447
        %v1449 = vmul.f32 %v1448, %v1260
        %v1450 = vadd.f32 %v1449, 1e-05
        %v1451 = vrsqrt.pop %v1450
        %v1452 = vmul.f32 %v1444, %v1451
        %v1453 = vld [vmem:[%s14] sm:$0x1]
        %v1455 = vlaneseq
        %v1456 = vshrl.u32 %v1455, 7
        %v1457 = vsub.s32 0, %v1456
        %v1458 = vrot.slane %v1453, %v1457
        %v1460 = vmul.f32 %v1452, %v1458
        %v1461 = vld [vmem:[%s15] sm:$0x1]
        %v1463 = vlaneseq
        %v1464 = vshrl.u32 %v1463, 7
        %v1465 = vsub.s32 0, %v1464
        %v1466 = vrot.slane %v1461, %v1465
        %v1468 = vadd.f32 %v1460, %v1466
        %1469 = vst.msk [vmem:[%s569] sm:$0xff] %vm606, %v1468
        %s1470 = sand.u32 %s386, 1
        %s1471 = scalar_lea.sflag [#allocation5], %s1470
        %s1472 = sand.u32 %s386, 1
        %s1473 = smul.addr %s1472, 8
        %s1474 = scalar_lea.vmem [#allocation9], %s1473
        // Predicated region
        $region97: #{tpu_custom_call.1} parent=83 // pred_check
          %p1475 = pneg %p396
        $region98: #{tpu_custom_call.1} parent=83 // pred_check_branch
          %1477 = sbr.rel (%p1475) target = $region100
        $region99: #{tpu_custom_call.1} parent=83 // pred_region
          %s1479 = ssub.s32 128, 128
          %1480 = vsyncadd %s1471, %s1479
          %s1481 = smul.addr %s32, 128
          %s1482 = scalar_lea.hbm %s16, %s1481
          %s1484 = sshll.u32 %s1474, 4
          %s1485 = int_to_ptr.vmem [resolvable:$true] %s1484
          %1487 = dma.vmem_to_hbm [thread:$0]  %s1485, 128, %s1482, %s1471
        $region100: #{tpu_custom_call.1} parent=83 // pred_fallthru
          _
      $region84: #{tpu_custom_call.1} parent=5 // pred_fallthru
        _
      %p1488 = scmp.le.s32.totalorder 2, %s27
      // Predicated region
      $region101: #{tpu_custom_call.1} parent=5 // pred_check
        %p1489 = pneg %p1488
      $region102: #{tpu_custom_call.1} parent=5 // pred_check_branch
        %1491 = sbr.rel (%p1489) target = $region104
      $region103: #{tpu_custom_call.1} parent=5 // pred_region
        %s1492 = ssub.s32 %s27, 2
        // Predicated region
        $region105: #{tpu_custom_call.1} parent=103 // pred_check
          %p1493 = pneg %p402
        $region106: #{tpu_custom_call.1} parent=103 // pred_check_branch
          %1495 = sbr.rel (%p1493) target = $region108
        $region107: #{tpu_custom_call.1} parent=103 // pred_region
          %s1496 = sand.u32 %s387, 1
          %s1497 = scalar_lea.sflag [#allocation5], %s1496
          %s1498 = sand.u32 %s387, 1
          %s1499 = smul.addr %s1498, 8
          %s1500 = scalar_lea.vmem [#allocation9], %s1499
          %1501 = dma.done %s1497, 128
        $region108: #{tpu_custom_call.1} parent=103 // pred_fallthru
          _
      $region104: #{tpu_custom_call.1} parent=5 // pred_fallthru
        _
    $region6: #{tpu_custom_call.1} parent=1 // loop_footer
      %s31 = sadd.s32 1, %s27
    $region7: #{tpu_custom_call.1} parent=1 // loop_footer_branch
      %26 = sbr.rel target = $region3
    $region8: #{tpu_custom_call.1} parent=1 // loop_exit
      _
    %1502 = vsyncpa [#allocation4], 1
    %s1503 = scalar_lea.sflag [#allocation4], 1
    %1504 = vsyncpa %s1503, 1
    %1505 = vsyncpa [#allocation7], 1
    %1506 = vsyncpa [#allocation5], 1
    %s1507 = scalar_lea.sflag [#allocation5], 1
    %1508 = vsyncpa %s1507, 1

</llo_original>
